<compile_context>
chip_gen: v5e
topology: v5e:2x2
jax: 0.10.0
libtpu: 0.0.40
codegen_flags: <defaults>
</compile_context>

<pallas_src>
import functools

import jax
import jax.numpy as jnp
from jax import lax
from jax.experimental import pallas as pl
from jax.experimental.pallas import tpu as pltpu

LANE = 128      # minor-dim (lane) tile
SUBLANE = 8     # second-minor (sublane) tile for f32

# ConvTranspose2d(k=4, s=2, p=1) sub-pixel phase taps:
# output phase r in {0,1} -> ((kernel_row, window_start into 1-padded h), ...)
_PHASE = (((1, 1), (3, 0)),   # r = 0
          ((0, 2), (2, 1)))   # r = 1


def _round_up(x, m):
    return (x + m - 1) // m * m


def _pad_tile(c, tile):
    """(padded channels, channel tile): lane-dense 128/256-wide tiles for big
    channel counts, full-dim blocks padded only to the sublane tile for small
    ones (avoids 16-32x zero padding in the toy regime)."""
    if c >= tile:
        cp = _round_up(c, tile)
        return cp, tile
    cp = _round_up(c, SUBLANE)
    return cp, cp


# ---------------------------------------------------------------------------
# Kernel A: LeakyReLU(0.2) + Conv2d(k=4,s=2,p=1,bias=False) + fused ReLU (from
# the up path).  Input is the spatially 1-padded, space-to-depth NHWC block.
# ---------------------------------------------------------------------------
def _down_conv_kernel(x_ref, w_ref, h_ref, *, Ho, Wo, fold, use_bf16):
    ct = h_ref.shape[-1]
    a = x_ref[0]                                     # [Ho+1, Wo+1, 4*Cin_p] f32
    a = jnp.where(a > 0, a, 0.2 * a)                 # LeakyReLU (f32 VPU math)
    if use_bf16:
        a = a.astype(jnp.bfloat16)                   # MXU operands only
    wins = [a[sh:sh + Ho, sw:sw + Wo, :].reshape(Ho * Wo, -1)
            for sh in range(2) for sw in range(2)]
    if fold:                                         # one dot, K = 16*Cin_p
        lhs = jnp.concatenate(wins, axis=-1)
        acc = jnp.dot(lhs, w_ref[...], preferred_element_type=jnp.float32)
    else:                                            # 4 dots, K = 4*Cin_p each
        acc = jnp.dot(wins[0], w_ref[0], preferred_element_type=jnp.float32)
        for t in range(1, 4):
            acc += jnp.dot(wins[t], w_ref[t], preferred_element_type=jnp.float32)
    h = jnp.maximum(acc, 0.0).reshape(Ho, Wo, ct).astype(h_ref.dtype)  # fused ReLU
    # zero only the 1-px border (4 thin stores); the interior write is the
    # single full-volume store (no full-block pre-zero).
    zrow = jnp.zeros((1, Wo + 2, ct), h_ref.dtype)
    zcol = jnp.zeros((Ho, 1, ct), h_ref.dtype)
    h_ref[0, 0:1, :, :] = zrow
    h_ref[0, Ho + 1:Ho + 2, :, :] = zrow
    h_ref[0, 1:Ho + 1, 0:1, :] = zcol
    h_ref[0, 1:Ho + 1, Wo + 1:Wo + 2, :] = zcol
    h_ref[0, 1:Ho + 1, 1:Wo + 1, :] = h


# ---------------------------------------------------------------------------
# Kernel B: ConvTranspose2d(k=4,s=2,p=1,bias=False) by sub-pixel phase
# decomposition (input already ReLU'd by kernel A) + BatchNorm partial stats.
# ---------------------------------------------------------------------------
def _up_conv_kernel(h_ref, w_ref, u_ref, s_ref, ss_ref, *, Ho, Wo, fold):
    ct = u_ref.shape[-1]
    a = h_ref[0]                                     # [Ho+2, Wo+2, inner_p]
    psum = jnp.zeros((1, ct), jnp.float32)
    psq = jnp.zeros((1, ct), jnp.float32)
    for r in range(2):
        for c in range(2):
            wins = [a[sh:sh + Ho, sw:sw + Wo, :].reshape(Ho * Wo, -1)
                    for (_, sh) in _PHASE[r] for (_, sw) in _PHASE[c]]
            if fold:                                 # one dot, K = 4*inner_p
                lhs = jnp.concatenate(wins, axis=-1)
                acc = jnp.dot(lhs, w_ref[r, c], preferred_element_type=jnp.float32)
            else:                                    # 4 dots, K = inner_p each
                acc = jnp.dot(wins[0], w_ref[r, c, 0],
                              preferred_element_type=jnp.float32)
                for t in range(1, 4):
                    acc += jnp.dot(wins[t], w_ref[r, c, t],
                                   preferred_element_type=jnp.float32)
            u_ref[0, r, c, :, :, :] = acc.reshape(Ho, Wo, ct).astype(u_ref.dtype)
            psum += jnp.sum(acc, axis=0, keepdims=True)       # f32 stats
            psq += jnp.sum(acc * acc, axis=0, keepdims=True)
    s_ref[...] = psum.reshape(1, 1, ct)
    ss_ref[...] = psq.reshape(1, 1, ct)


# ---------------------------------------------------------------------------
# Kernel C: apply the precomputed training-mode BatchNorm scale/shift.
# (mean/var/rsqrt finalized once in the wrapper, not per batch element.)
# ---------------------------------------------------------------------------
def _bn_apply_kernel(u_ref, scale_ref, shift_ref, o_ref):
    sc = scale_ref[0].astype(jnp.float32)            # [ct]
    sh = shift_ref[0].astype(jnp.float32)
    o_ref[...] = (u_ref[...].astype(jnp.float32) * sc + sh).astype(o_ref.dtype)


# ---------------------------------------------------------------------------
# Forward pass (NCHW in / NCHW out, like the PyTorch module)
# ---------------------------------------------------------------------------
def unet_skip_block_forward(x, params, *, use_bf16_mxu=False, channel_tile=LANE,
                            eps=1e-5):
    """forward(X) = cat([X, up(down(X))], dim=1) for the innermost block.

    use_bf16_mxu: cast MXU operands and the h / u HBM intermediates to bf16
      (recommended on v6e/v7x; accumulation and all VPU math stay f32).
    channel_tile: conv output-channel tile (set 256 on v6e/v7x when the channel
      counts allow; 128 is safe everywhere)."""
    N, c_in, H, W = x.shape
    s, p = 2, 1
    assert H % 2 == 0 and W % 2 == 0, "spatial dims must be even for k=4,s=2,p=1"
    assert params["w_down"].shape[1:] == (c_in, 4, 4)
    inner = params["w_down"].shape[0]
    outer = params["w_up"].shape[1]
    assert params["w_up"].shape == (inner, outer, 4, 4)
    Ho, Wo = H // 2, W // 2
    Hp, Wp = Ho + 1, Wo + 1                          # space-to-depth extent

    kdp = _round_up(s * s * c_in, SUBLANE)           # K chunk per (sh,sw) window
    inner_p, ct_a = _pad_tile(inner, channel_tile)
    outer_p, ct_b = _pad_tile(outer, channel_tile)
    fold_down = kdp < LANE                           # fold 4 windows -> K=4*kdp
    fold_up = inner_p < LANE                         # fold 4 taps -> K=4*inner_p

    f32 = jnp.float32
    mxu_dt = jnp.bfloat16 if use_bf16_mxu else f32
    inter_dt = jnp.bfloat16 if use_bf16_mxu else f32   # h / u HBM intermediates

    # ---- layout plumbing (one XLA relayout, replaces the old phase-split) ----
    x_nhwc = jnp.transpose(x, (0, 2, 3, 1)).astype(f32)
    xp = jnp.pad(x_nhwc, ((0, 0), (p, p), (p, p), (0, 0)))
    # space-to-depth: xs2d[n, m, q, (a*2+b)*c_in + ci] = xp[n, 2m+a, 2q+b, ci]
    xs2d = xp.reshape(N, Hp, 2, Wp, 2, c_in).transpose(0, 1, 3, 2, 4, 5)
    xs2d = xs2d.reshape(N, Hp, Wp, s * s * c_in)
    xs2d = jnp.pad(xs2d, ((0, 0), (0, 0), (0, 0), (0, kdp - s * s * c_in)))

    # ---- weight packing (wrapper-side, pre-cast to the MXU dtype) ----
    # down: [inner, c_in, kh, kw] -> per window (sh,sw): K index (a*2+b)*c_in+ci
    wd = params["w_down"].astype(f32).reshape(inner, c_in, 2, 2, 2, 2)
    wd = wd.transpose(2, 4, 3, 5, 1, 0).reshape(2, 2, s * s * c_in, inner)
    wd = jnp.pad(wd, ((0, 0), (0, 0), (0, kdp - s * s * c_in),
                      (0, inner_p - inner)))
    wd = (wd.reshape(4 * kdp, inner_p) if fold_down
          else wd.reshape(4, kdp, inner_p)).astype(mxu_dt)
    # up: ConvTranspose2d [inner, outer, kh, kw] -> per output phase (r,c) the
    # 2x2 taps, packed along K in the same order the kernel builds its LHS.
    wu_taps = [params["w_up"][:, :, kh, kw]
               for r in range(2) for c in range(2)
               for (kh, _) in _PHASE[r] for (kw, _) in _PHASE[c]]
    wu = jnp.stack(wu_taps, 0).astype(f32).reshape(2, 2, 4, inner, outer)
    wu = jnp.pad(wu, ((0, 0), (0, 0), (0, 0), (0, inner_p - inner),
                      (0, outer_p - outer)))
    wu = (wu.reshape(2, 2, 4 * inner_p, outer_p) if fold_up else wu).astype(mxu_dt)

    gamma = jnp.pad(params["gamma"].astype(f32), (0, outer_p - outer))
    beta = jnp.pad(params["beta"].astype(f32), (0, outer_p - outer))

    cparams = functools.partial(pltpu.CompilerParams,
                                vmem_limit_bytes=48 * 1024 * 1024)

    # ---- A) down conv ----
    # TODO(synk): halo'd spatial tiling (manual DMA) for feature maps too large
    #             for one VMEM block (first wall on v7x's 64 MiB VMEM).
    wd_spec = (pl.BlockSpec((4 * kdp, ct_a), lambda n, co: (0, co)) if fold_down
               else pl.BlockSpec((4, kdp, ct_a), lambda n, co: (0, 0, co)))
    h_pad = pl.pallas_call(
        functools.partial(_down_conv_kernel, Ho=Ho, Wo=Wo, fold=fold_down,
                          use_bf16=use_bf16_mxu),
        out_shape=jax.ShapeDtypeStruct((N, Ho + 2, Wo + 2, inner_p), inter_dt),
        grid=(N, inner_p // ct_a),
        in_specs=[pl.BlockSpec((1, Hp, Wp, kdp), lambda n, co: (n, 0, 0, 0)),
                  wd_spec],
        out_specs=pl.BlockSpec((1, Ho + 2, Wo + 2, ct_a),
                               lambda n, co: (n, 0, 0, co)),
        compiler_params=cparams(dimension_semantics=("parallel", "parallel")),
    )(xs2d, wd)

    # ---- B) up conv (sub-pixel phases) + BN partial statistics ----
    wu_spec = (pl.BlockSpec((2, 2, 4 * inner_p, ct_b),
                            lambda n, co: (0, 0, 0, co)) if fold_up
               else pl.BlockSpec((2, 2, 4, inner_p, ct_b),
                                 lambda n, co: (0, 0, 0, 0, co)))
    u_ph, psum, psumsq = pl.pallas_call(
        functools.partial(_up_conv_kernel, Ho=Ho, Wo=Wo, fold=fold_up),
        out_shape=(jax.ShapeDtypeStruct((N, 2, 2, Ho, Wo, outer_p), inter_dt),
                   jax.ShapeDtypeStruct((N, 1, outer_p), f32),
                   jax.ShapeDtypeStruct((N, 1, outer_p), f32)),
        grid=(N, outer_p // ct_b),
        in_specs=[pl.BlockSpec((1, Ho + 2, Wo + 2, inner_p),
                               lambda n, co: (n, 0, 0, 0)),
                  wu_spec],
        out_specs=(pl.BlockSpec((1, 2, 2, Ho, Wo, ct_b),
                                lambda n, co: (n, 0, 0, 0, 0, co)),
                   pl.BlockSpec((1, 1, ct_b), lambda n, co: (n, 0, co)),
                   pl.BlockSpec((1, 1, ct_b), lambda n, co: (n, 0, co))),
        compiler_params=cparams(dimension_semantics=("parallel", "parallel")),
    )(h_pad, wu)

    # ---- BN finalize once (tiny XLA op, hoisted out of the per-n grid) ----
    # NOTE: E[x^2]-E[x]^2 in f32 is cancellation-prone if |mean| >> std; fine
    # here, use a shifted/Welford accumulation for production sizes.
    count = float(N * H * W)
    mean = jnp.sum(psum, axis=(0, 1)) / count
    var = jnp.sum(psumsq, axis=(0, 1)) / count - mean * mean
    scale_v = gamma * lax.rsqrt(var + eps)
    shift_v = beta - mean * scale_v
    scale = scale_v.reshape(1, outer_p)
    shift = shift_v.reshape(1, outer_p)

    # ---- C) apply BN (channel-tiled; no in-kernel concat, minor dim is the
    #      channel tile -> lane-dense whenever outer >= 128) ----
    u_bn = pl.pallas_call(
        _bn_apply_kernel,
        out_shape=jax.ShapeDtypeStruct((N, 2, 2, Ho, Wo, outer_p), f32),
        grid=(N, outer_p // ct_b),
        in_specs=[pl.BlockSpec((1, 2, 2, Ho, Wo, ct_b),
                               lambda n, co: (n, 0, 0, 0, 0, co)),
                  pl.BlockSpec((1, ct_b), lambda n, co: (0, co)),
                  pl.BlockSpec((1, ct_b), lambda n, co: (0, co))],
        out_specs=pl.BlockSpec((1, 2, 2, Ho, Wo, ct_b),
                               lambda n, co: (n, 0, 0, 0, 0, co)),
        compiler_params=cparams(dimension_semantics=("parallel", "parallel")),
    )(u_ph, scale, shift)

    # phase-major channels-last -> NCHW, then the skip concat: both are
    # contiguous slab copies handled by XLA at the API boundary.
    u_nchw = u_bn[..., :outer].transpose(0, 5, 3, 1, 4, 2).reshape(N, outer, H, W)
    return jnp.concatenate([x.astype(f32), u_nchw], axis=1)


# ---------------------------------------------------------------------------
# Pure-JAX reference (lax convolutions, HIGHEST precision) for validation
# ---------------------------------------------------------------------------
def reference_forward(x, params, eps=1e-5):
    w_down, w_up = params["w_down"], params["w_up"]
    h = jnp.where(x > 0, x, 0.2 * x)
    h = lax.conv_general_dilated(h, w_down, (2, 2), [(1, 1), (1, 1)],
                                 dimension_numbers=("NCHW", "OIHW", "NCHW"),
                                 precision=lax.Precision.HIGHEST)
    h = jnp.maximum(h, 0.0)
    w_up_conv = jnp.flip(w_up, (2, 3)).transpose(1, 0, 2, 3)
    u = lax.conv_general_dilated(h, w_up_conv, (1, 1), [(2, 2), (2, 2)],
                                 lhs_dilation=(2, 2),
                                 dimension_numbers=("NCHW", "OIHW", "NCHW"),
                                 precision=lax.Precision.HIGHEST)
    mean = u.mean(axis=(0, 2, 3), keepdims=True)
    var = ((u - mean) ** 2).mean(axis=(0, 2, 3), keepdims=True)
    u = ((u - mean) * lax.rsqrt(var + eps)
         * params["gamma"].reshape(1, -1, 1, 1)
         + params["beta"].reshape(1, -1, 1, 1))
    return jnp.concatenate([x, u], axis=1)


if __name__ == "__main__":
    key = jax.random.PRNGKey(0)

    def make(outer_nf, inner_nf, n, h, w, kkey):
        kx, kd, ku, kg, kb = jax.random.split(kkey, 5)
        x = jax.random.normal(kx, (n, outer_nf, h, w), jnp.float32)
        params = {
            # Conv2d weight:          [inner, C_in=outer, k, k]
            "w_down": 0.1 * jax.random.normal(kd, (inner_nf, outer_nf, 4, 4),
                                              jnp.float32),
            # ConvTranspose2d weight: [C_in=inner, C_out=outer, k, k]
            "w_up": 0.1 * jax.random.normal(ku, (inner_nf, outer_nf, 4, 4),
                                            jnp.float32),
            "gamma": 1.0 + 0.1 * jax.random.normal(kg, (outer_nf,), jnp.float32),
            "beta": 0.1 * jax.random.normal(kb, (outer_nf,), jnp.float32),
        }
        return x, params

    k1, k2 = jax.random.split(key)

    # Small module-consistent shapes (input channels == outer_nf).
    x, params = make(outer_nf=4, inner_nf=8, n=2, h=16, w=16, kkey=k1)
    ref = jax.block_until_ready(reference_forward(x, params))

    out_f32 = jax.block_until_ready(
        jax.jit(functools.partial(unet_skip_block_forward,
                                  use_bf16_mxu=False))(x, params))
    assert out_f32.shape == (2, 8, 16, 16), out_f32.shape
    err = float(jnp.max(jnp.abs(out_f32 - ref)))
    assert err < 3e-3, f"f32 path max abs err {err}"

    out_bf16 = jax.block_until_ready(
        jax.jit(functools.partial(unet_skip_block_forward,
                                  use_bf16_mxu=True))(x, params))
    err_bf = float(jnp.max(jnp.abs(out_bf16 - ref)))
    assert err_bf < 2e-1, f"bf16 path max abs err {err_bf}"

    # Medium config exercising channel tiling and the non-folded (K>=128) path.
    x2, params2 = make(outer_nf=128, inner_nf=256, n=1, h=8, w=8, kkey=k2)
    ref2 = jax.block_until_ready(reference_forward(x2, params2))
    out2 = jax.block_until_ready(
        jax.jit(functools.partial(unet_skip_block_forward,
                                  use_bf16_mxu=False))(x2, params2))
    assert out2.shape == (1, 256, 8, 8), out2.shape
    err2 = float(jnp.max(jnp.abs(out2 - ref2)))
    assert err2 < 5e-3, f"medium f32 max abs err {err2}"

    print("KERNEL_OK")
</pallas_src>

<mosaic_0001>
module attributes {stable_mosaic.version = 11 : i64} {
  func.func @_down_conv_kernel(%arg0: i32, %arg1: i32, %arg2: memref<1x9x9x16xf32, #tpu.memory_space<vmem>>, %arg3: memref<64x8xf32, #tpu.memory_space<vmem>>, %arg4: memref<1x10x10x8xf32, #tpu.memory_space<vmem>>) attributes {dimension_semantics = [#tpu.dimension_semantics<parallel>, #tpu.dimension_semantics<parallel>], iteration_bounds = array<i64: 2, 1>, scalar_prefetch = 0 : i64, scratch_operands = 0 : i64, tpu.core_type = #tpu.core_type<tc>, window_params = [{transform_indices = @transform_0, window_bounds = array<i64: 1, 9, 9, 16>}, {transform_indices = @transform_1, window_bounds = array<i64: 64, 8>}, {transform_indices = @transform_2, window_bounds = array<i64: 1, 10, 10, 8>}]} {
    %c0 = arith.constant 0 : index
    %c0_0 = arith.constant 0 : index
    %c0_1 = arith.constant 0 : index
    %c0_2 = arith.constant 0 : index
    %0 = vector.load %arg2[%c0, %c0_0, %c0_1, %c0_2] : memref<1x9x9x16xf32, #tpu.memory_space<vmem>>, vector<1x9x9x16xf32>
    %1 = vector.shape_cast %0 : vector<1x9x9x16xf32> to vector<9x9x16xf32>
    %cst = arith.constant 0.000000e+00 : f32
    %2 = vector.broadcast %cst : f32 to vector<9x9x16xf32>
    %3 = arith.cmpf ogt, %1, %2 : vector<9x9x16xf32>
    %cst_3 = arith.constant 2.000000e-01 : f32
    %4 = vector.broadcast %cst_3 : f32 to vector<9x9x16xf32>
    %5 = arith.mulf %4, %1 : vector<9x9x16xf32>
    %6 = arith.select %3, %1, %5 : vector<9x9x16xi1>, vector<9x9x16xf32>
    %7 = vector.extract_strided_slice %6 {offsets = [0, 0, 0], sizes = [8, 8, 16], strides = [1, 1, 1]} : vector<9x9x16xf32> to vector<8x8x16xf32>
    %8 = vector.shape_cast %7 : vector<8x8x16xf32> to vector<64x16xf32>
    %9 = vector.extract_strided_slice %6 {offsets = [0, 1, 0], sizes = [8, 8, 16], strides = [1, 1, 1]} : vector<9x9x16xf32> to vector<8x8x16xf32>
    %10 = vector.shape_cast %9 : vector<8x8x16xf32> to vector<64x16xf32>
    %11 = vector.extract_strided_slice %6 {offsets = [1, 0, 0], sizes = [8, 8, 16], strides = [1, 1, 1]} : vector<9x9x16xf32> to vector<8x8x16xf32>
    %12 = vector.shape_cast %11 : vector<8x8x16xf32> to vector<64x16xf32>
    %13 = vector.extract_strided_slice %6 {offsets = [1, 1, 0], sizes = [8, 8, 16], strides = [1, 1, 1]} : vector<9x9x16xf32> to vector<8x8x16xf32>
    %14 = vector.shape_cast %13 : vector<8x8x16xf32> to vector<64x16xf32>
    %15 = tpu.concatenate %8, %10, %12, %14 in 1 : vector<64x16xf32>, vector<64x16xf32>, vector<64x16xf32>, vector<64x16xf32> -> vector<64x64xf32>
    %c0_4 = arith.constant 0 : index
    %c0_5 = arith.constant 0 : index
    %16 = vector.load %arg3[%c0_4, %c0_5] : memref<64x8xf32, #tpu.memory_space<vmem>>, vector<64x8xf32>
    %cst_6 = arith.constant dense<0.000000e+00> : vector<64x8xf32>
    %17 = tpu.matmul %15, %16, %cst_6 {dimension_numbers = #tpu.dot_dimension_numbers<[1], [0], [0], [1], [0, 0, 1, 1], [], []>} : vector<64x64xf32>, vector<64x8xf32>, vector<64x8xf32> -> vector<64x8xf32>
    %cst_7 = arith.constant 0.000000e+00 : f32
    %18 = vector.broadcast %cst_7 : f32 to vector<64x8xf32>
    %19 = arith.maximumf %17, %18 : vector<64x8xf32>
    %20 = vector.shape_cast %19 : vector<64x8xf32> to vector<8x8x8xf32>
    %cst_8 = arith.constant 0.000000e+00 : f32
    %21 = vector.broadcast %cst_8 : f32 to vector<1x10x8xf32>
    %cst_9 = arith.constant 0.000000e+00 : f32
    %22 = vector.broadcast %cst_9 : f32 to vector<8x1x8xf32>
    %c0_10 = arith.constant 0 : index
    %c0_11 = arith.constant 0 : index
    %c0_12 = arith.constant 0 : index
    %c0_13 = arith.constant 0 : index
    %23 = vector.load %arg4[%c0_10, %c0_11, %c0_12, %c0_13] : memref<1x10x10x8xf32, #tpu.memory_space<vmem>>, vector<1x1x10x8xf32>
    %24 = vector.shape_cast %23 : vector<1x1x10x8xf32> to vector<1x10x8xf32>
    %25 = vector.shape_cast %21 : vector<1x10x8xf32> to vector<1x1x10x8xf32>
    tpu.vector_store %arg4[%c0_10, %c0_11, %c0_12, %c0_13], %25 {strides = array<i32>} : memref<1x10x10x8xf32, #tpu.memory_space<vmem>>, vector<1x1x10x8xf32>,
    %c0_14 = arith.constant 0 : index
    %c9 = arith.constant 9 : index
    %c0_15 = arith.constant 0 : index
    %c0_16 = arith.constant 0 : index
    %26 = vector.load %arg4[%c0_14, %c9, %c0_15, %c0_16] : memref<1x10x10x8xf32, #tpu.memory_space<vmem>>, vector<1x1x10x8xf32>
    %27 = vector.shape_cast %26 : vector<1x1x10x8xf32> to vector<1x10x8xf32>
    %28 = vector.shape_cast %21 : vector<1x10x8xf32> to vector<1x1x10x8xf32>
    tpu.vector_store %arg4[%c0_14, %c9, %c0_15, %c0_16], %28 {strides = array<i32>} : memref<1x10x10x8xf32, #tpu.memory_space<vmem>>, vector<1x1x10x8xf32>,
    %c0_17 = arith.constant 0 : index
    %c1 = arith.constant 1 : index
    %c0_18 = arith.constant 0 : index
    %c0_19 = arith.constant 0 : index
    %29 = vector.load %arg4[%c0_17, %c1, %c0_18, %c0_19] : memref<1x10x10x8xf32, #tpu.memory_space<vmem>>, vector<1x8x1x8xf32>
    %30 = vector.shape_cast %29 : vector<1x8x1x8xf32> to vector<8x1x8xf32>
    %31 = vector.shape_cast %22 : vector<8x1x8xf32> to vector<1x8x1x8xf32>
    tpu.vector_store %arg4[%c0_17, %c1, %c0_18, %c0_19], %31 {strides = array<i32>} : memref<1x10x10x8xf32, #tpu.memory_space<vmem>>, vector<1x8x1x8xf32>,
    %c0_20 = arith.constant 0 : index
    %c1_21 = arith.constant 1 : index
    %c9_22 = arith.constant 9 : index
    %c0_23 = arith.constant 0 : index
    %32 = vector.load %arg4[%c0_20, %c1_21, %c9_22, %c0_23] : memref<1x10x10x8xf32, #tpu.memory_space<vmem>>, vector<1x8x1x8xf32>
    %33 = vector.shape_cast %32 : vector<1x8x1x8xf32> to vector<8x1x8xf32>
    %34 = vector.shape_cast %22 : vector<8x1x8xf32> to vector<1x8x1x8xf32>
    tpu.vector_store %arg4[%c0_20, %c1_21, %c9_22, %c0_23], %34 {strides = array<i32>} : memref<1x10x10x8xf32, #tpu.memory_space<vmem>>, vector<1x8x1x8xf32>,
    %c0_24 = arith.constant 0 : index
    %c1_25 = arith.constant 1 : index
    %c1_26 = arith.constant 1 : index
    %c0_27 = arith.constant 0 : index
    %35 = vector.load %arg4[%c0_24, %c1_25, %c1_26, %c0_27] : memref<1x10x10x8xf32, #tpu.memory_space<vmem>>, vector<1x8x8x8xf32>
    %36 = vector.shape_cast %35 : vector<1x8x8x8xf32> to vector<8x8x8xf32>
    %37 = vector.shape_cast %20 : vector<8x8x8xf32> to vector<1x8x8x8xf32>
    tpu.vector_store %arg4[%c0_24, %c1_25, %c1_26, %c0_27], %37 {strides = array<i32>} : memref<1x10x10x8xf32, #tpu.memory_space<vmem>>, vector<1x8x8x8xf32>,
    return
  }
  func.func @transform_0(%arg0: i32, %arg1: i32) -> (i32, i32, i32, i32) {
    %c0_i32 = arith.constant 0 : i32
    %c0_i32_0 = arith.constant 0 : i32
    %c0_i32_1 = arith.constant 0 : i32
    %c0_i32_2 = arith.constant 0 : i32
    return %arg0, %c0_i32, %c0_i32_0, %c0_i32_1 : i32, i32, i32, i32
  }
  func.func @transform_1(%arg0: i32, %arg1: i32) -> (i32, i32) {
    %c0_i32 = arith.constant 0 : i32
    %c0_i32_0 = arith.constant 0 : i32
    return %c0_i32, %arg1 : i32, i32
  }
  func.func @transform_2(%arg0: i32, %arg1: i32) -> (i32, i32, i32, i32) {
    %c0_i32 = arith.constant 0 : i32
    %c0_i32_0 = arith.constant 0 : i32
    %c0_i32_1 = arith.constant 0 : i32
    return %arg0, %c0_i32, %c0_i32_0, %arg1 : i32, i32, i32, i32
  }
}

module attributes {stable_mosaic.version = 11 : i64} {
  func.func @_up_conv_kernel(%arg0: i32, %arg1: i32, %arg2: memref<1x10x10x8xf32, #tpu.memory_space<vmem>>, %arg3: memref<2x2x32x8xf32, #tpu.memory_space<vmem>>, %arg4: memref<1x2x2x8x8x8xf32, #tpu.memory_space<vmem>>, %arg5: memref<1x1x8xf32, #tpu.memory_space<vmem>>, %arg6: memref<1x1x8xf32, #tpu.memory_space<vmem>>) attributes {dimension_semantics = [#tpu.dimension_semantics<parallel>, #tpu.dimension_semantics<parallel>], iteration_bounds = array<i64: 2, 1>, scalar_prefetch = 0 : i64, scratch_operands = 0 : i64, tpu.core_type = #tpu.core_type<tc>, window_params = [{transform_indices = @transform_0, window_bounds = array<i64: 1, 10, 10, 8>}, {transform_indices = @transform_1, window_bounds = array<i64: 2, 2, 32, 8>}, {transform_indices = @transform_2, window_bounds = array<i64: 1, 2, 2, 8, 8, 8>}, {transform_indices = @transform_3, window_bounds = array<i64: 1, 1, 8>}, {transform_indices = @transform_4, window_bounds = array<i64: 1, 1, 8>}]} {
    %c0 = arith.constant 0 : index
    %c0_0 = arith.constant 0 : index
    %c0_1 = arith.constant 0 : index
    %c0_2 = arith.constant 0 : index
    %0 = vector.load %arg2[%c0, %c0_0, %c0_1, %c0_2] : memref<1x10x10x8xf32, #tpu.memory_space<vmem>>, vector<1x10x10x8xf32>
    %1 = vector.shape_cast %0 : vector<1x10x10x8xf32> to vector<10x10x8xf32>
    %cst = arith.constant 0.000000e+00 : f32
    %2 = vector.broadcast %cst : f32 to vector<1x8xf32>
    %cst_3 = arith.constant 0.000000e+00 : f32
    %3 = vector.broadcast %cst_3 : f32 to vector<1x8xf32>
    %4 = vector.extract_strided_slice %1 {offsets = [1, 1, 0], sizes = [8, 8, 8], strides = [1, 1, 1]} : vector<10x10x8xf32> to vector<8x8x8xf32>
    %5 = vector.shape_cast %4 : vector<8x8x8xf32> to vector<64x8xf32>
    %6 = vector.extract_strided_slice %1 {offsets = [1, 0, 0], sizes = [8, 8, 8], strides = [1, 1, 1]} : vector<10x10x8xf32> to vector<8x8x8xf32>
    %7 = vector.shape_cast %6 : vector<8x8x8xf32> to vector<64x8xf32>
    %8 = vector.extract_strided_slice %1 {offsets = [0, 1, 0], sizes = [8, 8, 8], strides = [1, 1, 1]} : vector<10x10x8xf32> to vector<8x8x8xf32>
    %9 = vector.shape_cast %8 : vector<8x8x8xf32> to vector<64x8xf32>
    %10 = vector.extract_strided_slice %1 {offsets = [0, 0, 0], sizes = [8, 8, 8], strides = [1, 1, 1]} : vector<10x10x8xf32> to vector<8x8x8xf32>
    %11 = vector.shape_cast %10 : vector<8x8x8xf32> to vector<64x8xf32>
    %12 = tpu.concatenate %5, %7, %9, %11 in 1 : vector<64x8xf32>, vector<64x8xf32>, vector<64x8xf32>, vector<64x8xf32> -> vector<64x32xf32>
    %c0_4 = arith.constant 0 : index
    %c0_5 = arith.constant 0 : index
    %c0_6 = arith.constant 0 : index
    %c0_7 = arith.constant 0 : index
    %13 = vector.load %arg3[%c0_4, %c0_5, %c0_6, %c0_7] : memref<2x2x32x8xf32, #tpu.memory_space<vmem>>, vector<1x1x32x8xf32>
    %14 = vector.shape_cast %13 : vector<1x1x32x8xf32> to vector<32x8xf32>
    %cst_8 = arith.constant dense<0.000000e+00> : vector<64x8xf32>
    %15 = tpu.matmul %12, %14, %cst_8 {dimension_numbers = #tpu.dot_dimension_numbers<[1], [0], [0], [1], [0, 0, 1, 1], [], []>} : vector<64x32xf32>, vector<32x8xf32>, vector<64x8xf32> -> vector<64x8xf32>
    %16 = vector.shape_cast %15 : vector<64x8xf32> to vector<8x8x8xf32>
    %c0_9 = arith.constant 0 : index
    %c0_10 = arith.constant 0 : index
    %c0_11 = arith.constant 0 : index
    %c0_12 = arith.constant 0 : index
    %c0_13 = arith.constant 0 : index
    %c0_14 = arith.constant 0 : index
    %17 = vector.load %arg4[%c0_9, %c0_10, %c0_11, %c0_12, %c0_13, %c0_14] : memref<1x2x2x8x8x8xf32, #tpu.memory_space<vmem>>, vector<1x1x1x8x8x8xf32>
    %18 = vector.shape_cast %17 : vector<1x1x1x8x8x8xf32> to vector<8x8x8xf32>
    %19 = vector.shape_cast %16 : vector<8x8x8xf32> to vector<1x1x1x8x8x8xf32>
    tpu.vector_store %arg4[%c0_9, %c0_10, %c0_11, %c0_12, %c0_13, %c0_14], %19 {strides = array<i32>} : memref<1x2x2x8x8x8xf32, #tpu.memory_space<vmem>>, vector<1x1x1x8x8x8xf32>,
    %cst_15 = arith.constant dense<0.000000e+00> : vector<8xf32>
    %20 = vector.multi_reduction <add>, %15, %cst_15 [0] : vector<64x8xf32> to vector<8xf32>
    %21 = vector.shape_cast %20 : vector<8xf32> to vector<1x8xf32>
    %22 = arith.addf %2, %21 : vector<1x8xf32>
    %23 = arith.mulf %15, %15 : vector<64x8xf32>
    %cst_16 = arith.constant dense<0.000000e+00> : vector<8xf32>
    %24 = vector.multi_reduction <add>, %23, %cst_16 [0] : vector<64x8xf32> to vector<8xf32>
    %25 = vector.shape_cast %24 : vector<8xf32> to vector<1x8xf32>
    %26 = arith.addf %3, %25 : vector<1x8xf32>
    %27 = vector.extract_strided_slice %1 {offsets = [1, 2, 0], sizes = [8, 8, 8], strides = [1, 1, 1]} : vector<10x10x8xf32> to vector<8x8x8xf32>
    %28 = vector.shape_cast %27 : vector<8x8x8xf32> to vector<64x8xf32>
    %29 = vector.extract_strided_slice %1 {offsets = [1, 1, 0], sizes = [8, 8, 8], strides = [1, 1, 1]} : vector<10x10x8xf32> to vector<8x8x8xf32>
    %30 = vector.shape_cast %29 : vector<8x8x8xf32> to vector<64x8xf32>
    %31 = vector.extract_strided_slice %1 {offsets = [0, 2, 0], sizes = [8, 8, 8], strides = [1, 1, 1]} : vector<10x10x8xf32> to vector<8x8x8xf32>
    %32 = vector.shape_cast %31 : vector<8x8x8xf32> to vector<64x8xf32>
    %33 = vector.extract_strided_slice %1 {offsets = [0, 1, 0], sizes = [8, 8, 8], strides = [1, 1, 1]} : vector<10x10x8xf32> to vector<8x8x8xf32>
    %34 = vector.shape_cast %33 : vector<8x8x8xf32> to vector<64x8xf32>
    %35 = tpu.concatenate %28, %30, %32, %34 in 1 : vector<64x8xf32>, vector<64x8xf32>, vector<64x8xf32>, vector<64x8xf32> -> vector<64x32xf32>
    %c0_17 = arith.constant 0 : index
    %c1 = arith.constant 1 : index
    %c0_18 = arith.constant 0 : index
    %c0_19 = arith.constant 0 : index
    %36 = vector.load %arg3[%c0_17, %c1, %c0_18, %c0_19] : memref<2x2x32x8xf32, #tpu.memory_space<vmem>>, vector<1x1x32x8xf32>
    %37 = vector.shape_cast %36 : vector<1x1x32x8xf32> to vector<32x8xf32>
    %cst_20 = arith.constant dense<0.000000e+00> : vector<64x8xf32>
    %38 = tpu.matmul %35, %37, %cst_20 {dimension_numbers = #tpu.dot_dimension_numbers<[1], [0], [0], [1], [0, 0, 1, 1], [], []>} : vector<64x32xf32>, vector<32x8xf32>, vector<64x8xf32> -> vector<64x8xf32>
    %39 = vector.shape_cast %38 : vector<64x8xf32> to vector<8x8x8xf32>
    %c0_21 = arith.constant 0 : index
    %c0_22 = arith.constant 0 : index
    %c1_23 = arith.constant 1 : index
    %c0_24 = arith.constant 0 : index
    %c0_25 = arith.constant 0 : index
    %c0_26 = arith.constant 0 : index
    %40 = vector.load %arg4[%c0_21, %c0_22, %c1_23, %c0_24, %c0_25, %c0_26] : memref<1x2x2x8x8x8xf32, #tpu.memory_space<vmem>>, vector<1x1x1x8x8x8xf32>
    %41 = vector.shape_cast %40 : vector<1x1x1x8x8x8xf32> to vector<8x8x8xf32>
    %42 = vector.shape_cast %39 : vector<8x8x8xf32> to vector<1x1x1x8x8x8xf32>
    tpu.vector_store %arg4[%c0_21, %c0_22, %c1_23, %c0_24, %c0_25, %c0_26], %42 {strides = array<i32>} : memref<1x2x2x8x8x8xf32, #tpu.memory_space<vmem>>, vector<1x1x1x8x8x8xf32>,
    %cst_27 = arith.constant dense<0.000000e+00> : vector<8xf32>
    %43 = vector.multi_reduction <add>, %38, %cst_27 [0] : vector<64x8xf32> to vector<8xf32>
    %44 = vector.shape_cast %43 : vector<8xf32> to vector<1x8xf32>
    %45 = arith.addf %22, %44 : vector<1x8xf32>
    %46 = arith.mulf %38, %38 : vector<64x8xf32>
    %cst_28 = arith.constant dense<0.000000e+00> : vector<8xf32>
    %47 = vector.multi_reduction <add>, %46, %cst_28 [0] : vector<64x8xf32> to vector<8xf32>
    %48 = vector.shape_cast %47 : vector<8xf32> to vector<1x8xf32>
    %49 = arith.addf %26, %48 : vector<1x8xf32>
    %50 = vector.extract_strided_slice %1 {offsets = [2, 1, 0], sizes = [8, 8, 8], strides = [1, 1, 1]} : vector<10x10x8xf32> to vector<8x8x8xf32>
    %51 = vector.shape_cast %50 : vector<8x8x8xf32> to vector<64x8xf32>
    %52 = vector.extract_strided_slice %1 {offsets = [2, 0, 0], sizes = [8, 8, 8], strides = [1, 1, 1]} : vector<10x10x8xf32> to vector<8x8x8xf32>
    %53 = vector.shape_cast %52 : vector<8x8x8xf32> to vector<64x8xf32>
    %54 = vector.extract_strided_slice %1 {offsets = [1, 1, 0], sizes = [8, 8, 8], strides = [1, 1, 1]} : vector<10x10x8xf32> to vector<8x8x8xf32>
    %55 = vector.shape_cast %54 : vector<8x8x8xf32> to vector<64x8xf32>
    %56 = vector.extract_strided_slice %1 {offsets = [1, 0, 0], sizes = [8, 8, 8], strides = [1, 1, 1]} : vector<10x10x8xf32> to vector<8x8x8xf32>
    %57 = vector.shape_cast %56 : vector<8x8x8xf32> to vector<64x8xf32>
    %58 = tpu.concatenate %51, %53, %55, %57 in 1 : vector<64x8xf32>, vector<64x8xf32>, vector<64x8xf32>, vector<64x8xf32> -> vector<64x32xf32>
    %c1_29 = arith.constant 1 : index
    %c0_30 = arith.constant 0 : index
    %c0_31 = arith.constant 0 : index
    %c0_32 = arith.constant 0 : index
    %59 = vector.load %arg3[%c1_29, %c0_30, %c0_31, %c0_32] : memref<2x2x32x8xf32, #tpu.memory_space<vmem>>, vector<1x1x32x8xf32>
    %60 = vector.shape_cast %59 : vector<1x1x32x8xf32> to vector<32x8xf32>
    %cst_33 = arith.constant dense<0.000000e+00> : vector<64x8xf32>
    %61 = tpu.matmul %58, %60, %cst_33 {dimension_numbers = #tpu.dot_dimension_numbers<[1], [0], [0], [1], [0, 0, 1, 1], [], []>} : vector<64x32xf32>, vector<32x8xf32>, vector<64x8xf32> -> vector<64x8xf32>
    %62 = vector.shape_cast %61 : vector<64x8xf32> to vector<8x8x8xf32>
    %c0_34 = arith.constant 0 : index
    %c1_35 = arith.constant 1 : index
    %c0_36 = arith.constant 0 : index
    %c0_37 = arith.constant 0 : index
    %c0_38 = arith.constant 0 : index
    %c0_39 = arith.constant 0 : index
    %63 = vector.load %arg4[%c0_34, %c1_35, %c0_36, %c0_37, %c0_38, %c0_39] : memref<1x2x2x8x8x8xf32, #tpu.memory_space<vmem>>, vector<1x1x1x8x8x8xf32>
    %64 = vector.shape_cast %63 : vector<1x1x1x8x8x8xf32> to vector<8x8x8xf32>
    %65 = vector.shape_cast %62 : vector<8x8x8xf32> to vector<1x1x1x8x8x8xf32>
    tpu.vector_store %arg4[%c0_34, %c1_35, %c0_36, %c0_37, %c0_38, %c0_39], %65 {strides = array<i32>} : memref<1x2x2x8x8x8xf32, #tpu.memory_space<vmem>>, vector<1x1x1x8x8x8xf32>,
    %cst_40 = arith.constant dense<0.000000e+00> : vector<8xf32>
    %66 = vector.multi_reduction <add>, %61, %cst_40 [0] : vector<64x8xf32> to vector<8xf32>
    %67 = vector.shape_cast %66 : vector<8xf32> to vector<1x8xf32>
    %68 = arith.addf %45, %67 : vector<1x8xf32>
    %69 = arith.mulf %61, %61 : vector<64x8xf32>
    %cst_41 = arith.constant dense<0.000000e+00> : vector<8xf32>
    %70 = vector.multi_reduction <add>, %69, %cst_41 [0] : vector<64x8xf32> to vector<8xf32>
    %71 = vector.shape_cast %70 : vector<8xf32> to vector<1x8xf32>
    %72 = arith.addf %49, %71 : vector<1x8xf32>
    %73 = vector.extract_strided_slice %1 {offsets = [2, 2, 0], sizes = [8, 8, 8], strides = [1, 1, 1]} : vector<10x10x8xf32> to vector<8x8x8xf32>
    %74 = vector.shape_cast %73 : vector<8x8x8xf32> to vector<64x8xf32>
    %75 = vector.extract_strided_slice %1 {offsets = [2, 1, 0], sizes = [8, 8, 8], strides = [1, 1, 1]} : vector<10x10x8xf32> to vector<8x8x8xf32>
    %76 = vector.shape_cast %75 : vector<8x8x8xf32> to vector<64x8xf32>
    %77 = vector.extract_strided_slice %1 {offsets = [1, 2, 0], sizes = [8, 8, 8], strides = [1, 1, 1]} : vector<10x10x8xf32> to vector<8x8x8xf32>
    %78 = vector.shape_cast %77 : vector<8x8x8xf32> to vector<64x8xf32>
    %79 = vector.extract_strided_slice %1 {offsets = [1, 1, 0], sizes = [8, 8, 8], strides = [1, 1, 1]} : vector<10x10x8xf32> to vector<8x8x8xf32>
    %80 = vector.shape_cast %79 : vector<8x8x8xf32> to vector<64x8xf32>
    %81 = tpu.concatenate %74, %76, %78, %80 in 1 : vector<64x8xf32>, vector<64x8xf32>, vector<64x8xf32>, vector<64x8xf32> -> vector<64x32xf32>
    %c1_42 = arith.constant 1 : index
    %c1_43 = arith.constant 1 : index
    %c0_44 = arith.constant 0 : index
    %c0_45 = arith.constant 0 : index
    %82 = vector.load %arg3[%c1_42, %c1_43, %c0_44, %c0_45] : memref<2x2x32x8xf32, #tpu.memory_space<vmem>>, vector<1x1x32x8xf32>
    %83 = vector.shape_cast %82 : vector<1x1x32x8xf32> to vector<32x8xf32>
    %cst_46 = arith.constant dense<0.000000e+00> : vector<64x8xf32>
    %84 = tpu.matmul %81, %83, %cst_46 {dimension_numbers = #tpu.dot_dimension_numbers<[1], [0], [0], [1], [0, 0, 1, 1], [], []>} : vector<64x32xf32>, vector<32x8xf32>, vector<64x8xf32> -> vector<64x8xf32>
    %85 = vector.shape_cast %84 : vector<64x8xf32> to vector<8x8x8xf32>
    %c0_47 = arith.constant 0 : index
    %c1_48 = arith.constant 1 : index
    %c1_49 = arith.constant 1 : index
    %c0_50 = arith.constant 0 : index
    %c0_51 = arith.constant 0 : index
    %c0_52 = arith.constant 0 : index
    %86 = vector.load %arg4[%c0_47, %c1_48, %c1_49, %c0_50, %c0_51, %c0_52] : memref<1x2x2x8x8x8xf32, #tpu.memory_space<vmem>>, vector<1x1x1x8x8x8xf32>
    %87 = vector.shape_cast %86 : vector<1x1x1x8x8x8xf32> to vector<8x8x8xf32>
    %88 = vector.shape_cast %85 : vector<8x8x8xf32> to vector<1x1x1x8x8x8xf32>
    tpu.vector_store %arg4[%c0_47, %c1_48, %c1_49, %c0_50, %c0_51, %c0_52], %88 {strides = array<i32>} : memref<1x2x2x8x8x8xf32, #tpu.memory_space<vmem>>, vector<1x1x1x8x8x8xf32>,
    %cst_53 = arith.constant dense<0.000000e+00> : vector<8xf32>
    %89 = vector.multi_reduction <add>, %84, %cst_53 [0] : vector<64x8xf32> to vector<8xf32>
    %90 = vector.shape_cast %89 : vector<8xf32> to vector<1x8xf32>
    %91 = arith.addf %68, %90 : vector<1x8xf32>
    %92 = arith.mulf %84, %84 : vector<64x8xf32>
    %cst_54 = arith.constant dense<0.000000e+00> : vector<8xf32>
    %93 = vector.multi_reduction <add>, %92, %cst_54 [0] : vector<64x8xf32> to vector<8xf32>
    %94 = vector.shape_cast %93 : vector<8xf32> to vector<1x8xf32>
    %95 = arith.addf %72, %94 : vector<1x8xf32>
    %96 = vector.shape_cast %91 : vector<1x8xf32> to vector<1x1x8xf32>
    %c0_55 = arith.constant 0 : index
    %c0_56 = arith.constant 0 : index
    %c0_57 = arith.constant 0 : index
    %97 = vector.load %arg5[%c0_55, %c0_56, %c0_57] : memref<1x1x8xf32, #tpu.memory_space<vmem>>, vector<1x1x8xf32>
    tpu.vector_store %arg5[%c0_55, %c0_56, %c0_57], %96 {strides = array<i32>} : memref<1x1x8xf32, #tpu.memory_space<vmem>>, vector<1x1x8xf32>,
    %98 = vector.shape_cast %95 : vector<1x8xf32> to vector<1x1x8xf32>
    %c0_58 = arith.constant 0 : index
    %c0_59 = arith.constant 0 : index
    %c0_60 = arith.constant 0 : index
    %99 = vector.load %arg6[%c0_58, %c0_59, %c0_60] : memref<1x1x8xf32, #tpu.memory_space<vmem>>, vector<1x1x8xf32>
    tpu.vector_store %arg6[%c0_58, %c0_59, %c0_60], %98 {strides = array<i32>} : memref<1x1x8xf32, #tpu.memory_space<vmem>>, vector<1x1x8xf32>,
    return
  }
  func.func @transform_0(%arg0: i32, %arg1: i32) -> (i32, i32, i32, i32) {
    %c0_i32 = arith.constant 0 : i32
    %c0_i32_0 = arith.constant 0 : i32
    %c0_i32_1 = arith.constant 0 : i32
    %c0_i32_2 = arith.constant 0 : i32
    return %arg0, %c0_i32, %c0_i32_0, %c0_i32_1 : i32, i32, i32, i32
  }
  func.func @transform_1(%arg0: i32, %arg1: i32) -> (i32, i32, i32, i32) {
    %c0_i32 = arith.constant 0 : i32
    %c0_i32_0 = arith.constant 0 : i32
    %c0_i32_1 = arith.constant 0 : i32
    %c0_i32_2 = arith.constant 0 : i32
    return %c0_i32, %c0_i32_0, %c0_i32_1, %arg1 : i32, i32, i32, i32
  }
  func.func @transform_2(%arg0: i32, %arg1: i32) -> (i32, i32, i32, i32, i32, i32) {
    %c0_i32 = arith.constant 0 : i32
    %c0_i32_0 = arith.constant 0 : i32
    %c0_i32_1 = arith.constant 0 : i32
    %c0_i32_2 = arith.constant 0 : i32
    %c0_i32_3 = arith.constant 0 : i32
    return %arg0, %c0_i32, %c0_i32_0, %c0_i32_1, %c0_i32_2, %arg1 : i32, i32, i32, i32, i32, i32
  }
  func.func @transform_3(%arg0: i32, %arg1: i32) -> (i32, i32, i32) {
    %c0_i32 = arith.constant 0 : i32
    %c0_i32_0 = arith.constant 0 : i32
    return %arg0, %c0_i32, %arg1 : i32, i32, i32
  }
  func.func @transform_4(%arg0: i32, %arg1: i32) -> (i32, i32, i32) {
    %c0_i32 = arith.constant 0 : i32
    %c0_i32_0 = arith.constant 0 : i32
    return %arg0, %c0_i32, %arg1 : i32, i32, i32
  }
}

module attributes {stable_mosaic.version = 11 : i64} {
  func.func @_bn_apply_kernel(%arg0: i32, %arg1: i32, %arg2: memref<1x2x2x8x8x8xf32, #tpu.memory_space<vmem>>, %arg3: memref<1x8xf32, #tpu.memory_space<vmem>>, %arg4: memref<1x8xf32, #tpu.memory_space<vmem>>, %arg5: memref<1x2x2x8x8x8xf32, #tpu.memory_space<vmem>>) attributes {dimension_semantics = [#tpu.dimension_semantics<parallel>, #tpu.dimension_semantics<parallel>], iteration_bounds = array<i64: 2, 1>, scalar_prefetch = 0 : i64, scratch_operands = 0 : i64, tpu.core_type = #tpu.core_type<tc>, window_params = [{transform_indices = @transform_0, window_bounds = array<i64: 1, 2, 2, 8, 8, 8>}, {transform_indices = @transform_1, window_bounds = array<i64: 1, 8>}, {transform_indices = @transform_2, window_bounds = array<i64: 1, 8>}, {transform_indices = @transform_3, window_bounds = array<i64: 1, 2, 2, 8, 8, 8>}]} {
    %c0 = arith.constant 0 : index
    %c0_0 = arith.constant 0 : index
    %0 = vector.load %arg3[%c0, %c0_0] : memref<1x8xf32, #tpu.memory_space<vmem>>, vector<1x8xf32>
    %1 = vector.shape_cast %0 : vector<1x8xf32> to vector<8xf32>
    %c0_1 = arith.constant 0 : index
    %c0_2 = arith.constant 0 : index
    %2 = vector.load %arg4[%c0_1, %c0_2] : memref<1x8xf32, #tpu.memory_space<vmem>>, vector<1x8xf32>
    %3 = vector.shape_cast %2 : vector<1x8xf32> to vector<8xf32>
    %c0_3 = arith.constant 0 : index
    %c0_4 = arith.constant 0 : index
    %c0_5 = arith.constant 0 : index
    %c0_6 = arith.constant 0 : index
    %c0_7 = arith.constant 0 : index
    %c0_8 = arith.constant 0 : index
    %4 = vector.load %arg2[%c0_3, %c0_4, %c0_5, %c0_6, %c0_7, %c0_8] : memref<1x2x2x8x8x8xf32, #tpu.memory_space<vmem>>, vector<1x2x2x8x8x8xf32>
    %5 = vector.shape_cast %1 : vector<8xf32> to vector<1x1x1x1x1x8xf32>
    %6 = vector.broadcast %5 : vector<1x1x1x1x1x8xf32> to vector<1x2x2x8x8x8xf32>
    %7 = arith.mulf %4, %6 : vector<1x2x2x8x8x8xf32>
    %8 = vector.shape_cast %3 : vector<8xf32> to vector<1x1x1x1x1x8xf32>
    %9 = vector.broadcast %8 : vector<1x1x1x1x1x8xf32> to vector<1x2x2x8x8x8xf32>
    %10 = arith.addf %7, %9 : vector<1x2x2x8x8x8xf32>
    %c0_9 = arith.constant 0 : index
    %c0_10 = arith.constant 0 : index
    %c0_11 = arith.constant 0 : index
    %c0_12 = arith.constant 0 : index
    %c0_13 = arith.constant 0 : index
    %c0_14 = arith.constant 0 : index
    %11 = vector.load %arg5[%c0_9, %c0_10, %c0_11, %c0_12, %c0_13, %c0_14] : memref<1x2x2x8x8x8xf32, #tpu.memory_space<vmem>>, vector<1x2x2x8x8x8xf32>
    tpu.vector_store %arg5[%c0_9, %c0_10, %c0_11, %c0_12, %c0_13, %c0_14], %10 {strides = array<i32>} : memref<1x2x2x8x8x8xf32, #tpu.memory_space<vmem>>, vector<1x2x2x8x8x8xf32>,
    return
  }
  func.func @transform_0(%arg0: i32, %arg1: i32) -> (i32, i32, i32, i32, i32, i32) {
    %c0_i32 = arith.constant 0 : i32
    %c0_i32_0 = arith.constant 0 : i32
    %c0_i32_1 = arith.constant 0 : i32
    %c0_i32_2 = arith.constant 0 : i32
    %c0_i32_3 = arith.constant 0 : i32
    return %arg0, %c0_i32, %c0_i32_0, %c0_i32_1, %c0_i32_2, %arg1 : i32, i32, i32, i32, i32, i32
  }
  func.func @transform_1(%arg0: i32, %arg1: i32) -> (i32, i32) {
    %c0_i32 = arith.constant 0 : i32
    %c0_i32_0 = arith.constant 0 : i32
    return %c0_i32, %arg1 : i32, i32
  }
  func.func @transform_2(%arg0: i32, %arg1: i32) -> (i32, i32) {
    %c0_i32 = arith.constant 0 : i32
    %c0_i32_0 = arith.constant 0 : i32
    return %c0_i32, %arg1 : i32, i32
  }
  func.func @transform_3(%arg0: i32, %arg1: i32) -> (i32, i32, i32, i32, i32, i32) {
    %c0_i32 = arith.constant 0 : i32
    %c0_i32_0 = arith.constant 0 : i32
    %c0_i32_1 = arith.constant 0 : i32
    %c0_i32_2 = arith.constant 0 : i32
    %c0_i32_3 = arith.constant 0 : i32
    return %arg0, %c0_i32, %c0_i32_0, %c0_i32_1, %c0_i32_2, %arg1 : i32, i32, i32, i32, i32, i32
  }
}

</mosaic_0001>

<llo_original>
// kernel: unet_skip_block_forward.3
$region0: #{unet_skip_block_forward.3}
  #allocation0 [shape = 'u32[]', space=smem, size = 0x4, offset = 0x4, fixed_abs, tag = 'smem constant byte address 0x4 - core index']
  #allocation1 [shape = 'u32[72,128]{1,0:T(1,128)}', space=vmem, size = 0x9000, scoped, tag = 'internal scratch']
  %s0 = inlined_call_operand.vmem [shape: f32[2,9,9,16], index: 0, kind: input, shape index: {}]
  %s1 = inlined_call_operand.vmem [shape: f32[64,8], index: 1, kind: input, shape index: {}]
  %s2 = inlined_call_operand.vmem [shape: f32[2,10,10,8], index: 2, kind: output, shape index: {}]
  %s3 = sld [smem:[#allocation0]]
  $region41: #{unet_skip_block_forward.3} parent=0
    _
  %s5 = ssub.s32 1, %s3
  %s6 = scalar_select 0, %s5, %s3
  loop: start=0, step=1, limit=4
  $region2: #{unet_skip_block_forward.3} parent=0 // loop_pre_header
    _
  $region3: #{unet_skip_block_forward.3} parent=0 // loop_header
    %s8 = sphi 0, %s12
    %p9 = scmp.ge.s32.totalorder %s8, 4
    %s15 = sphi 0, %s27
    %s16 = sphi 0, %s23
    %s17 = sphi 0, %s15
    %s18 = sphi 0, %s16
    %s19 = sphi 0, %s17
    %s20 = sphi 0, %s18
    %s30 = sphi 0, %s32
    %s33 = sphi 0, %s30
    %s34 = sphi 0, %s33
    %s50 = sphi 0, %s34
    %s56 = sphi 0, %s58
    %s59 = sphi 0, %s56
    %s60 = sphi 0, %s59
    %s76 = sphi 0, %s60
    %s84 = sphi 0, %s86
    %s87 = sphi 0, %s84
    %s88 = sphi 0, %s87
    %s104 = sphi 0, %s88
  $region4: #{unet_skip_block_forward.3} parent=0 // loop_header_branch
    %11 = sbr.rel (%p9) target = $region8
  $region5: #{unet_skip_block_forward.3} parent=0 // loop_body
    %s13 = ssub.s32 %s8, 1
    %s14 = ssub.s32 %s8, 2
    %s21 = sadd.s32 1, %s16
    %p22 = scmp.ge.s32.totalorder %s21, 1
    %s23 = scalar_select %p22, 0, %s21
    %s24 = sadd.s32 1, %s15
    %s25 = scalar_select %p22, %s24, %s15
    %p26 = scmp.ge.s32.totalorder %s25, 2
    %s27 = scalar_select %p26, 0, %s25
    %s28 = ssub.s32 %s15, %s27
    %p29 = scmp.eq.s32.totalorder %s28, 0
    %s31 = sadd.s32 %s30, 1
    %s32 = scalar_select %p29, %s30, %s31
    %p35 = pneg %p29
    %p36 = scmp.eq.s32.totalorder %s8, 1
    %p37 = por %p35, %p36
    %p38 = scmp.ne.s32.totalorder %s30, %s33
    %p39 = scmp.eq.s32.totalorder %s8, 0
    %p40 = por %p38, %p39
    %p41 = scmp.ne.s32.totalorder %s30, %s33
    %p42 = scmp.eq.s32.totalorder %s13, 1
    %p43 = por %p41, %p42
    %p44 = scmp.ne.s32.totalorder %s33, %s34
    %p45 = scmp.eq.s32.totalorder %s13, 0
    %p46 = por %p44, %p45
    %p47 = scmp.ne.s32.totalorder %s33, %s34
    %p48 = scmp.eq.s32.totalorder %s14, 1
    %p49 = por %p47, %p48
    %p51 = scmp.ne.s32.totalorder %s34, %s50
    %p52 = scmp.eq.s32.totalorder %s14, 0
    %p53 = por %p51, %p52
    %s54 = ssub.s32 %s16, %s23
    %p55 = scmp.eq.s32.totalorder %s54, 0
    %s57 = sadd.s32 %s56, 1
    %s58 = scalar_select %p55, %s56, %s57
    %p61 = pneg %p55
    %p62 = scmp.eq.s32.totalorder %s8, 1
    %p63 = por %p61, %p62
    %p64 = scmp.ne.s32.totalorder %s56, %s59
    %p65 = scmp.eq.s32.totalorder %s8, 0
    %p66 = por %p64, %p65
    %p67 = scmp.ne.s32.totalorder %s56, %s59
    %p68 = scmp.eq.s32.totalorder %s13, 1
    %p69 = por %p67, %p68
    %p70 = scmp.ne.s32.totalorder %s59, %s60
    %p71 = scmp.eq.s32.totalorder %s13, 0
    %p72 = por %p70, %p71
    %p73 = scmp.ne.s32.totalorder %s59, %s60
    %p74 = scmp.eq.s32.totalorder %s14, 1
    %p75 = por %p73, %p74
    %p77 = scmp.ne.s32.totalorder %s60, %s76
    %p78 = scmp.eq.s32.totalorder %s14, 0
    %p79 = por %p77, %p78
    %s80 = ssub.s32 %s15, %s27
    %s81 = ssub.s32 %s16, %s23
    %s82 = sor.u32 %s80, %s81
    %p83 = scmp.eq.s32.totalorder %s82, 0
    %s85 = sadd.s32 %s84, 1
    %s86 = scalar_select %p83, %s84, %s85
    %p89 = pneg %p83
    %p90 = scmp.eq.s32.totalorder %s8, 1
    %p91 = por %p89, %p90
    %p92 = scmp.ne.s32.totalorder %s84, %s87
    %p93 = scmp.eq.s32.totalorder %s8, 0
    %p94 = por %p92, %p93
    %p95 = scmp.ne.s32.totalorder %s84, %s87
    %p96 = scmp.eq.s32.totalorder %s13, 1
    %p97 = por %p95, %p96
    %p98 = scmp.ne.s32.totalorder %s87, %s88
    %p99 = scmp.eq.s32.totalorder %s13, 0
    %p100 = por %p98, %p99
    %p101 = scmp.ne.s32.totalorder %s87, %s88
    %p102 = scmp.eq.s32.totalorder %s14, 1
    %p103 = por %p101, %p102
    %p105 = scmp.ne.s32.totalorder %s88, %s104
    %p106 = scmp.eq.s32.totalorder %s14, 0
    %p107 = por %p105, %p106
    %p108 = scmp.le.s32.totalorder 1, %s8
    %p109 = scmp.lt.s32.totalorder %s8, 3
    %p110 = pnand %p108, %p109
    %p111 = pneg %p110
    // Predicated region
    $region9: #{unet_skip_block_forward.3} parent=5 // pred_check
      _
    $region10: #{unet_skip_block_forward.3} parent=5 // pred_check_branch
      %113 = sbr.rel (%p110) target = $region12
    $region11: #{unet_skip_block_forward.3} parent=5 // pred_region
      %s114 = ssub.s32 %s8, 1
      // Predicated region
      $region13: #{unet_skip_block_forward.3} parent=11 // pred_check
        %p115 = pneg %p72
      $region14: #{unet_skip_block_forward.3} parent=11 // pred_check_branch
        %117 = sbr.rel (%p115) target = $region16
      $region15: #{unet_skip_block_forward.3} parent=11 // pred_region
        %p118 = scmp.lt.s32.totalorder %s18, 0
        %s119 = scalar_select %p118, %s18, 0
        %s120 = smul.addr %s119, 8
        %s121 = scalar_lea.vmem %s1, %s120
      $region16: #{unet_skip_block_forward.3} parent=11 // pred_fallthru
        _
    $region12: #{unet_skip_block_forward.3} parent=5 // pred_fallthru
      _
    %p122 = scmp.lt.s32.totalorder %s8, 2
    // Predicated region
    $region17: #{unet_skip_block_forward.3} parent=5 // pred_check
      %p123 = pneg %p122
    $region18: #{unet_skip_block_forward.3} parent=5 // pred_check_branch
      %125 = sbr.rel (%p123) target = $region20
    $region19: #{unet_skip_block_forward.3} parent=5 // pred_region
      // Predicated region
      $region21: #{unet_skip_block_forward.3} parent=19 // pred_check
        %p126 = pneg %p40
      $region22: #{unet_skip_block_forward.3} parent=19 // pred_check_branch
        %128 = sbr.rel (%p126) target = $region24
      $region23: #{unet_skip_block_forward.3} parent=19 // pred_region
        %p129 = scmp.lt.s32.totalorder %s15, 1
        %s130 = scalar_select %p129, %s15, 1
        %s131 = smul.addr %s130, 18
        %s132 = smul.addr %s131, 8
        %s133 = scalar_lea.vmem %s0, %s132
      $region24: #{unet_skip_block_forward.3} parent=19 // pred_fallthru
        _
    $region20: #{unet_skip_block_forward.3} parent=5 // pred_fallthru
      _
    %p134 = scmp.le.s32.totalorder 1, %s8
    %p135 = scmp.lt.s32.totalorder %s8, 3
    %p136 = pnand %p134, %p135
    %p137 = pneg %p136
    // Predicated region
    $region25: #{unet_skip_block_forward.3} parent=5 // pred_check
      _
    $region26: #{unet_skip_block_forward.3} parent=5 // pred_check_branch
      %139 = sbr.rel (%p136) target = $region28
    $region27: #{unet_skip_block_forward.3} parent=5 // pred_region
      %s140 = ssub.s32 %s8, 1
      %p141 = scmp.lt.s32.totalorder %s17, 1
      %s142 = scalar_select %p141, %s17, 1
      %s143 = smul.addr %s142, 18
      %s144 = smul.addr %s143, 8
      %s145 = scalar_lea.vmem %s0, %s144
      %p146 = pneg %p46
      %p147 = pneg %p43
      %p148 = scmp.lt.s32.totalorder %s18, 0
      %s149 = scalar_select %p148, %s18, 0
      %s150 = smul.addr %s149, 8
      %s151 = scalar_lea.vmem %s1, %s150
      %p152 = pneg %p72
      %p153 = pneg %p69
      %p154 = pneg %p100
      %p155 = pneg %p97
      %p156 = scmp.lt.s32.totalorder %s17, 1
      %s157 = scalar_select %p156, %s17, 1
      %p158 = scmp.lt.s32.totalorder %s18, 0
      %s159 = scalar_select %p158, %s18, 0
      %s160 = smul.addr %s157, 20
      %s161 = sadd.s32 %s159, %s160
      %s162 = smul.addr %s161, 8
      %s163 = scalar_lea.vmem %s2, %s162
      %p164 = scmp.lt.s32.totalorder %s17, 1
      %s165 = scalar_select %p164, %s17, 1
      %s166 = smul.addr %s165, 18
      %s167 = smul.addr %s166, 8
      %s168 = scalar_lea.vmem %s0, %s167
      %p169 = scmp.lt.s32.totalorder %s18, 0
      %s170 = scalar_select %p169, %s18, 0
      %s171 = smul.addr %s170, 8
      %s172 = scalar_lea.vmem %s1, %s171
      %p173 = scmp.lt.s32.totalorder %s17, 1
      %s174 = scalar_select %p173, %s17, 1
      %p175 = scmp.lt.s32.totalorder %s18, 0
      %s176 = scalar_select %p175, %s18, 0
      %s177 = smul.addr %s174, 20
      %s178 = sadd.s32 %s176, %s177
      %s179 = smul.addr %s178, 8
      %s180 = scalar_lea.vmem %s2, %s179
      %v181 = vld [vmem:[%s168] sm:$0xff]
      %v182 = vld [vmem:[%s168 + $0x8] sm:$0x1]
      %v183 = vld [vmem:[%s168 + $0x10] sm:$0xff]
      %v184 = vld [vmem:[%s168 + $0x18] sm:$0x1]
      %v185 = vld [vmem:[%s168 + $0x20] sm:$0xff]
      %v186 = vld [vmem:[%s168 + $0x28] sm:$0x1]
      %v187 = vld [vmem:[%s168 + $0x30] sm:$0xff]
      %v188 = vld [vmem:[%s168 + $0x38] sm:$0x1]
      %v189 = vld [vmem:[%s168 + $0x40] sm:$0xff]
      %v190 = vld [vmem:[%s168 + $0x48] sm:$0x1]
      %v191 = vld [vmem:[%s168 + $0x50] sm:$0xff]
      %v192 = vld [vmem:[%s168 + $0x58] sm:$0x1]
      %v193 = vld [vmem:[%s168 + $0x60] sm:$0xff]
      %v194 = vld [vmem:[%s168 + $0x68] sm:$0x1]
      %v195 = vld [vmem:[%s168 + $0x70] sm:$0xff]
      %v196 = vld [vmem:[%s168 + $0x78] sm:$0x1]
      %v197 = vld [vmem:[%s168 + $0x80] sm:$0xff]
      %v198 = vld [vmem:[%s168 + $0x88] sm:$0x1]
      %vm199 = vcmp.gt.f32.partialorder %v181, 0.0
      %vm200 = vcmp.gt.f32.partialorder %v182, 0.0
      %vm201 = vcmp.gt.f32.partialorder %v183, 0.0
      %vm202 = vcmp.gt.f32.partialorder %v184, 0.0
      %vm203 = vcmp.gt.f32.partialorder %v185, 0.0
      %vm204 = vcmp.gt.f32.partialorder %v186, 0.0
      %vm205 = vcmp.gt.f32.partialorder %v187, 0.0
      %vm206 = vcmp.gt.f32.partialorder %v188, 0.0
      %vm207 = vcmp.gt.f32.partialorder %v189, 0.0
      %vm208 = vcmp.gt.f32.partialorder %v190, 0.0
      %vm209 = vcmp.gt.f32.partialorder %v191, 0.0
      %vm210 = vcmp.gt.f32.partialorder %v192, 0.0
      %vm211 = vcmp.gt.f32.partialorder %v193, 0.0
      %vm212 = vcmp.gt.f32.partialorder %v194, 0.0
      %vm213 = vcmp.gt.f32.partialorder %v195, 0.0
      %vm214 = vcmp.gt.f32.partialorder %v196, 0.0
      %vm215 = vcmp.gt.f32.partialorder %v197, 0.0
      %vm216 = vcmp.gt.f32.partialorder %v198, 0.0
      %v217 = vmul.f32 %v181, 0.2
      %v218 = vmul.f32 %v182, 0.2
      %v219 = vmul.f32 %v183, 0.2
      %v220 = vmul.f32 %v184, 0.2
      %v221 = vmul.f32 %v185, 0.2
      %v222 = vmul.f32 %v186, 0.2
      %v223 = vmul.f32 %v187, 0.2
      %v224 = vmul.f32 %v188, 0.2
      %v225 = vmul.f32 %v189, 0.2
      %v226 = vmul.f32 %v190, 0.2
      %v227 = vmul.f32 %v191, 0.2
      %v228 = vmul.f32 %v192, 0.2
      %v229 = vmul.f32 %v193, 0.2
      %v230 = vmul.f32 %v194, 0.2
      %v231 = vmul.f32 %v195, 0.2
      %v232 = vmul.f32 %v196, 0.2
      %v233 = vmul.f32 %v197, 0.2
      %v234 = vmul.f32 %v198, 0.2
      %v235 = vsel %vm199, %v181, %v217
      %v236 = vsel %vm200, %v182, %v218
      %v237 = vsel %vm201, %v183, %v219
      %v238 = vsel %vm202, %v184, %v220
      %v239 = vsel %vm203, %v185, %v221
      %v240 = vsel %vm204, %v186, %v222
      %v241 = vsel %vm205, %v187, %v223
      %v242 = vsel %vm206, %v188, %v224
      %v243 = vsel %vm207, %v189, %v225
      %v244 = vsel %vm208, %v190, %v226
      %v245 = vsel %vm209, %v191, %v227
      %v246 = vsel %vm210, %v192, %v228
      %v247 = vsel %vm211, %v193, %v229
      %v248 = vsel %vm212, %v194, %v230
      %v249 = vsel %vm213, %v195, %v231
      %v250 = vsel %vm214, %v196, %v232
      %v251 = vsel %vm215, %v197, %v233
      %v252 = vsel %vm216, %v198, %v234
      %vm269 = vcmask 1046528
      %v270 = vrot.slane %v235, 1
      %v271 = vrot.slane %v236, 1
      %v272 = vsel %vm269, %v270, %v271
      %v273 = vrot.slane %v237, 1
      %v274 = vrot.slane %v238, 1
      %v275 = vsel %vm269, %v273, %v274
      %v276 = vrot.slane %v239, 1
      %v277 = vrot.slane %v240, 1
      %v278 = vsel %vm269, %v276, %v277
      %v279 = vrot.slane %v241, 1
      %v280 = vrot.slane %v242, 1
      %v281 = vsel %vm269, %v279, %v280
      %v282 = vrot.slane %v243, 1
      %v283 = vrot.slane %v244, 1
      %v284 = vsel %vm269, %v282, %v283
      %v285 = vrot.slane %v245, 1
      %v286 = vrot.slane %v246, 1
      %v287 = vsel %vm269, %v285, %v286
      %v288 = vrot.slane %v247, 1
      %v289 = vrot.slane %v248, 1
      %v290 = vsel %vm269, %v288, %v289
      %v291 = vrot.slane %v249, 1
      %v292 = vrot.slane %v250, 1
      %v293 = vsel %vm269, %v291, %v292
      %v296 = vrot.slane %v251, 1
      %v297 = vrot.slane %v252, 1
      %v298 = vsel %vm269, %v296, %v297
      %299 = vrot.lane.b32.xlu0 %v272, 16
      %v300 = vpop.permute.xlu0 %299
      %301 = vrot.lane.b32.xlu0 %v275, 16
      %v302 = vpop.permute.xlu0 %301
      %303 = vrot.lane.b32.xlu0 %v278, 16
      %v304 = vpop.permute.xlu0 %303
      %305 = vrot.lane.b32.xlu0 %v281, 16
      %v306 = vpop.permute.xlu0 %305
      %307 = vrot.lane.b32.xlu0 %v284, 16
      %v308 = vpop.permute.xlu0 %307
      %309 = vrot.lane.b32.xlu0 %v287, 16
      %v310 = vpop.permute.xlu0 %309
      %311 = vrot.lane.b32.xlu0 %v290, 16
      %v312 = vpop.permute.xlu0 %311
      %313 = vrot.lane.b32.xlu0 %v293, 16
      %v314 = vpop.permute.xlu0 %313
      %323 = vrot.lane.b32.xlu0 %v237, 32
      %v324 = vpop.permute.xlu0 %323
      %325 = vrot.lane.b32.xlu0 %v239, 32
      %v326 = vpop.permute.xlu0 %325
      %327 = vrot.lane.b32.xlu0 %v241, 32
      %v328 = vpop.permute.xlu0 %327
      %329 = vrot.lane.b32.xlu0 %v243, 32
      %v330 = vpop.permute.xlu0 %329
      %331 = vrot.lane.b32.xlu0 %v245, 32
      %v332 = vpop.permute.xlu0 %331
      %333 = vrot.lane.b32.xlu0 %v247, 32
      %v334 = vpop.permute.xlu0 %333
      %335 = vrot.lane.b32.xlu0 %v249, 32
      %v336 = vpop.permute.xlu0 %335
      %337 = vrot.lane.b32.xlu0 %v251, 32
      %v338 = vpop.permute.xlu0 %337
      %347 = vrot.lane.b32.xlu0 %v275, 48
      %v348 = vpop.permute.xlu0 %347
      %349 = vrot.lane.b32.xlu0 %v278, 48
      %v350 = vpop.permute.xlu0 %349
      %351 = vrot.lane.b32.xlu0 %v281, 48
      %v352 = vpop.permute.xlu0 %351
      %353 = vrot.lane.b32.xlu0 %v284, 48
      %v354 = vpop.permute.xlu0 %353
      %355 = vrot.lane.b32.xlu0 %v287, 48
      %v356 = vpop.permute.xlu0 %355
      %357 = vrot.lane.b32.xlu0 %v290, 48
      %v358 = vpop.permute.xlu0 %357
      %359 = vrot.lane.b32.xlu0 %v293, 48
      %v360 = vpop.permute.xlu0 %359
      %361 = vrot.lane.b32.xlu0 %v298, 48
      %v362 = vpop.permute.xlu0 %361
      %vm371 = vcmask 130048
      %v372 = vsel %vm371, %v235, %v300
      %v373 = vsel %vm371, %v237, %v302
      %v374 = vsel %vm371, %v239, %v304
      %v375 = vsel %vm371, %v241, %v306
      %v376 = vsel %vm371, %v243, %v308
      %v377 = vsel %vm371, %v245, %v310
      %v378 = vsel %vm371, %v247, %v312
      %v379 = vsel %vm371, %v249, %v314
      %vm380 = vcmask 261120
      %v381 = vsel %vm380, %v372, %v324
      %v382 = vsel %vm380, %v373, %v326
      %v383 = vsel %vm380, %v374, %v328
      %v384 = vsel %vm380, %v375, %v330
      %v385 = vsel %vm380, %v376, %v332
      %v386 = vsel %vm380, %v377, %v334
      %v387 = vsel %vm380, %v378, %v336
      %v388 = vsel %vm380, %v379, %v338
      %vm389 = vcmask 392192
      %v390 = vsel %vm389, %v381, %v348
      %v391 = vsel %vm389, %v382, %v350
      %v392 = vsel %vm389, %v383, %v352
      %v393 = vsel %vm389, %v384, %v354
      %v394 = vsel %vm389, %v385, %v356
      %v395 = vsel %vm389, %v386, %v358
      %v396 = vsel %vm389, %v387, %v360
      %v397 = vsel %vm389, %v388, %v362
      %v398 = vld [vmem:[%s172] sm:$0xff]
      %v399 = vld [vmem:[%s172 + $0x8] sm:$0xff]
      %v400 = vld [vmem:[%s172 + $0x10] sm:$0xff]
      %v401 = vld [vmem:[%s172 + $0x18] sm:$0xff]
      %v402 = vld [vmem:[%s172 + $0x20] sm:$0xff]
      %v403 = vld [vmem:[%s172 + $0x28] sm:$0xff]
      %v404 = vld [vmem:[%s172 + $0x30] sm:$0xff]
      %v405 = vld [vmem:[%s172 + $0x38] sm:$0xff]
      %vm406 = vcmask 523264
      %v408 = vsel %vm406, %v390, 0
      %v411 = vsel %vm406, %v391, 0
      %v414 = vsel %vm406, %v392, 0
      %v417 = vsel %vm406, %v393, 0
      %v420 = vsel %vm406, %v394, 0
      %v423 = vsel %vm406, %v395, 0
      %v426 = vsel %vm406, %v396, 0
      %v429 = vsel %vm406, %v397, 0
      %431 = vmatpush.msra.mxu0 0.0
      %432 = vmatpush.msra.mxu0 0.0
      %433 = vmatpush.msra.mxu0 0.0
      %434 = vmatpush.msra.mxu0 0.0
      %435 = vmatpush.msra.mxu0 0.0
      %436 = vmatpush.msra.mxu0 0.0
      %437 = vmatpush.msra.mxu0 0.0
      %438 = vmatpush.msra.mxu0 0.0
      %439 = vmatpush.msra.mxu0 %v405
      %440 = vmatpush.msra.mxu0 %v404
      %441 = vmatpush.msra.mxu0 %v403
      %442 = vmatpush.msra.mxu0 %v402
      %443 = vmatpush.msra.mxu0 %v401
      %444 = vmatpush.msra.mxu0 %v400
      %445 = vmatpush.msra.mxu0 %v399
      %446 = vmatpush.msra.mxu0 %v398
      %447 = vmatmul.f32.gmra.mxu0 %v408
      %v448 = vpop.f32.mrf.mxu0
      %v449 = vadd.f32 0.0, %v448
      %450 = vmatmul.f32.gmra.mxu0 %v411
      %v451 = vpop.f32.mrf.mxu0
      %v452 = vadd.f32 0.0, %v451
      %453 = vmatmul.f32.gmra.mxu0 %v414
      %v454 = vpop.f32.mrf.mxu0
      %v455 = vadd.f32 0.0, %v454
      %456 = vmatmul.f32.gmra.mxu0 %v417
      %v457 = vpop.f32.mrf.mxu0
      %v458 = vadd.f32 0.0, %v457
      %459 = vmatmul.f32.gmra.mxu0 %v420
      %v460 = vpop.f32.mrf.mxu0
      %v461 = vadd.f32 0.0, %v460
      %462 = vmatmul.f32.gmra.mxu0 %v423
      %v463 = vpop.f32.mrf.mxu0
      %v464 = vadd.f32 0.0, %v463
      %465 = vmatmul.f32.gmra.mxu0 %v426
      %v466 = vpop.f32.mrf.mxu0
      %v467 = vadd.f32 0.0, %v466
      %468 = vmatmul.f32.gmra.mxu0 %v429
      %v469 = vpop.f32.mrf.mxu0
      %v470 = vadd.f32 0.0, %v469
      %471 = vdwg.mxu0
      %v472 = vmax.f32 %v449, 0.0
      %v473 = vmax.f32 %v452, 0.0
      %v474 = vmax.f32 %v455, 0.0
      %v475 = vmax.f32 %v458, 0.0
      %v476 = vmax.f32 %v461, 0.0
      %v477 = vmax.f32 %v464, 0.0
      %v478 = vmax.f32 %v467, 0.0
      %v479 = vmax.f32 %v470, 0.0
      %vm480 = vcmask 64512
      %481 = vst.msk [vmem:[%s180] sm:$0xff] %vm480, 0.0
      %vm482 = vcmask 58368
      %483 = vst.msk [vmem:[%s180 + $0x8] sm:$0x3] %vm482, 0.0
      %s484 = scalar_lea.vmem %s180, 144
      %485 = vst.msk [vmem:[%s484] sm:$0xff] %vm480, 0.0
      %486 = vst.msk [vmem:[%s484 + $0x8] sm:$0x3] %vm482, 0.0
      %s487 = scalar_lea.vmem %s180, 16
      %vm488 = vcmask 57344
      %489 = vst.msk [vmem:[%s487] sm:$0x1] %vm488, 0.0
      %490 = vst.msk [vmem:[%s487 + $0x10] sm:$0x1] %vm488, 0.0
      %491 = vst.msk [vmem:[%s487 + $0x20] sm:$0x1] %vm488, 0.0
      %492 = vst.msk [vmem:[%s487 + $0x30] sm:$0x1] %vm488, 0.0
      %493 = vst.msk [vmem:[%s487 + $0x40] sm:$0x1] %vm488, 0.0
      %494 = vst.msk [vmem:[%s487 + $0x50] sm:$0x1] %vm488, 0.0
      %495 = vst.msk [vmem:[%s487 + $0x60] sm:$0x1] %vm488, 0.0
      %496 = vst.msk [vmem:[%s487 + $0x70] sm:$0x1] %vm488, 0.0
      %497 = vst.msk [vmem:[%s487 + $0x9] sm:$0x1] %vm488, 0.0
      %498 = vst.msk [vmem:[%s487 + $0x19] sm:$0x1] %vm488, 0.0
      %499 = vst.msk [vmem:[%s487 + $0x29] sm:$0x1] %vm488, 0.0
      %500 = vst.msk [vmem:[%s487 + $0x39] sm:$0x1] %vm488, 0.0
      %501 = vst.msk [vmem:[%s487 + $0x49] sm:$0x1] %vm488, 0.0
      %502 = vst.msk [vmem:[%s487 + $0x59] sm:$0x1] %vm488, 0.0
      %503 = vst.msk [vmem:[%s487 + $0x69] sm:$0x1] %vm488, 0.0
      %504 = vst.msk [vmem:[%s487 + $0x79] sm:$0x1] %vm488, 0.0
      %505 = vst.msk [vmem:[%s487 + $0x1] sm:$0xff] %vm480, %v472
      %506 = vst.msk [vmem:[%s487 + $0x11] sm:$0xff] %vm480, %v473
      %507 = vst.msk [vmem:[%s487 + $0x21] sm:$0xff] %vm480, %v474
      %508 = vst.msk [vmem:[%s487 + $0x31] sm:$0xff] %vm480, %v475
      %509 = vst.msk [vmem:[%s487 + $0x41] sm:$0xff] %vm480, %v476
      %510 = vst.msk [vmem:[%s487 + $0x51] sm:$0xff] %vm480, %v477
      %511 = vst.msk [vmem:[%s487 + $0x61] sm:$0xff] %vm480, %v478
      %512 = vst.msk [vmem:[%s487 + $0x71] sm:$0xff] %vm480, %v479
      %p513 = scmp.lt.s32.totalorder %s17, 1
      %s514 = scalar_select %p513, %s17, 1
      %p515 = scmp.lt.s32.totalorder %s18, 0
      %s516 = scalar_select %p515, %s18, 0
      %s517 = smul.addr %s514, 20
      %s518 = sadd.s32 %s516, %s517
      %s519 = smul.addr %s518, 8
      %s520 = scalar_lea.vmem %s2, %s519
      // Predicated region
      $region29: #{unet_skip_block_forward.3} parent=27 // pred_check
        %p521 = pneg %p97
      $region30: #{unet_skip_block_forward.3} parent=27 // pred_check_branch
        %523 = sbr.rel (%p521) target = $region32
      $region31: #{unet_skip_block_forward.3} parent=27 // pred_region
        _
      $region32: #{unet_skip_block_forward.3} parent=27 // pred_fallthru
        _
    $region28: #{unet_skip_block_forward.3} parent=5 // pred_fallthru
      _
    %p524 = scmp.le.s32.totalorder 2, %s8
    // Predicated region
    $region33: #{unet_skip_block_forward.3} parent=5 // pred_check
      %p525 = pneg %p524
    $region34: #{unet_skip_block_forward.3} parent=5 // pred_check_branch
      %527 = sbr.rel (%p525) target = $region36
    $region35: #{unet_skip_block_forward.3} parent=5 // pred_region
      %s528 = ssub.s32 %s8, 2
      // Predicated region
      $region37: #{unet_skip_block_forward.3} parent=35 // pred_check
        %p529 = pneg %p103
      $region38: #{unet_skip_block_forward.3} parent=35 // pred_check_branch
        %531 = sbr.rel (%p529) target = $region40
      $region39: #{unet_skip_block_forward.3} parent=35 // pred_region
        %p532 = scmp.lt.s32.totalorder %s19, 1
        %s533 = scalar_select %p532, %s19, 1
        %p534 = scmp.lt.s32.totalorder %s20, 0
        %s535 = scalar_select %p534, %s20, 0
        %s536 = smul.addr %s533, 20
        %s537 = sadd.s32 %s535, %s536
        %s538 = smul.addr %s537, 8
        %s539 = scalar_lea.vmem %s2, %s538
      $region40: #{unet_skip_block_forward.3} parent=35 // pred_fallthru
        _
    $region36: #{unet_skip_block_forward.3} parent=5 // pred_fallthru
      _
  $region6: #{unet_skip_block_forward.3} parent=0 // loop_footer
    %s12 = sadd.s32 1, %s8
  $region7: #{unet_skip_block_forward.3} parent=0 // loop_footer_branch
    %7 = sbr.rel target = $region3
  $region8: #{unet_skip_block_forward.3} parent=0 // loop_exit
    _

// kernel: unet_skip_block_forward.4
$region0: #{unet_skip_block_forward.4}
  #allocation0 [shape = 'u32[]', space=smem, size = 0x4, offset = 0x4, fixed_abs, tag = 'smem constant byte address 0x4 - core index']
  #allocation1 [shape = 'u32[72,128]{1,0:T(1,128)}', space=vmem, size = 0x9000, scoped, tag = 'internal scratch']
  %s0 = inlined_call_operand.vmem [shape: f32[2,10,10,8], index: 0, kind: input, shape index: {}]
  %s1 = inlined_call_operand.vmem [shape: f32[2,2,32,8], index: 1, kind: input, shape index: {}]
  %s2 = inlined_call_operand.vmem [shape: f32[2,2,2,8,8,8], index: 2, kind: output, shape index: {0}]
  %s3 = inlined_call_operand.vmem [shape: f32[2,1,8], index: 3, kind: output, shape index: {1}]
  %s4 = inlined_call_operand.vmem [shape: f32[2,1,8], index: 4, kind: output, shape index: {2}]
  %5 = xla_tuple %s2, %s3, %s4
  %s6 = sld [smem:[#allocation0]]
  $region57: #{unet_skip_block_forward.4} parent=0
    _
  %s8 = ssub.s32 1, %s6
  %s9 = scalar_select 0, %s8, %s6
  loop: start=0, step=1, limit=4
  $region2: #{unet_skip_block_forward.4} parent=0 // loop_pre_header
    _
  $region3: #{unet_skip_block_forward.4} parent=0 // loop_header
    %s11 = sphi 0, %s15
    %p12 = scmp.ge.s32.totalorder %s11, 4
    %s18 = sphi 0, %s30
    %s19 = sphi 0, %s26
    %s20 = sphi 0, %s18
    %s21 = sphi 0, %s19
    %s22 = sphi 0, %s20
    %s23 = sphi 0, %s21
    %s33 = sphi 0, %s35
    %s36 = sphi 0, %s33
    %s37 = sphi 0, %s36
    %s53 = sphi 0, %s37
    %s59 = sphi 0, %s61
    %s62 = sphi 0, %s59
    %s63 = sphi 0, %s62
    %s79 = sphi 0, %s63
    %s87 = sphi 0, %s89
    %s90 = sphi 0, %s87
    %s91 = sphi 0, %s90
    %s107 = sphi 0, %s91
    %s115 = sphi 0, %s117
    %s118 = sphi 0, %s115
    %s119 = sphi 0, %s118
    %s135 = sphi 0, %s119
    %s143 = sphi 0, %s145
    %s146 = sphi 0, %s143
    %s147 = sphi 0, %s146
    %s163 = sphi 0, %s147
  $region4: #{unet_skip_block_forward.4} parent=0 // loop_header_branch
    %14 = sbr.rel (%p12) target = $region8
  $region5: #{unet_skip_block_forward.4} parent=0 // loop_body
    %s16 = ssub.s32 %s11, 1
    %s17 = ssub.s32 %s11, 2
    %s24 = sadd.s32 1, %s19
    %p25 = scmp.ge.s32.totalorder %s24, 1
    %s26 = scalar_select %p25, 0, %s24
    %s27 = sadd.s32 1, %s18
    %s28 = scalar_select %p25, %s27, %s18
    %p29 = scmp.ge.s32.totalorder %s28, 2
    %s30 = scalar_select %p29, 0, %s28
    %s31 = ssub.s32 %s18, %s30
    %p32 = scmp.eq.s32.totalorder %s31, 0
    %s34 = sadd.s32 %s33, 1
    %s35 = scalar_select %p32, %s33, %s34
    %p38 = pneg %p32
    %p39 = scmp.eq.s32.totalorder %s11, 1
    %p40 = por %p38, %p39
    %p41 = scmp.ne.s32.totalorder %s33, %s36
    %p42 = scmp.eq.s32.totalorder %s11, 0
    %p43 = por %p41, %p42
    %p44 = scmp.ne.s32.totalorder %s33, %s36
    %p45 = scmp.eq.s32.totalorder %s16, 1
    %p46 = por %p44, %p45
    %p47 = scmp.ne.s32.totalorder %s36, %s37
    %p48 = scmp.eq.s32.totalorder %s16, 0
    %p49 = por %p47, %p48
    %p50 = scmp.ne.s32.totalorder %s36, %s37
    %p51 = scmp.eq.s32.totalorder %s17, 1
    %p52 = por %p50, %p51
    %p54 = scmp.ne.s32.totalorder %s37, %s53
    %p55 = scmp.eq.s32.totalorder %s17, 0
    %p56 = por %p54, %p55
    %s57 = ssub.s32 %s19, %s26
    %p58 = scmp.eq.s32.totalorder %s57, 0
    %s60 = sadd.s32 %s59, 1
    %s61 = scalar_select %p58, %s59, %s60
    %p64 = pneg %p58
    %p65 = scmp.eq.s32.totalorder %s11, 1
    %p66 = por %p64, %p65
    %p67 = scmp.ne.s32.totalorder %s59, %s62
    %p68 = scmp.eq.s32.totalorder %s11, 0
    %p69 = por %p67, %p68
    %p70 = scmp.ne.s32.totalorder %s59, %s62
    %p71 = scmp.eq.s32.totalorder %s16, 1
    %p72 = por %p70, %p71
    %p73 = scmp.ne.s32.totalorder %s62, %s63
    %p74 = scmp.eq.s32.totalorder %s16, 0
    %p75 = por %p73, %p74
    %p76 = scmp.ne.s32.totalorder %s62, %s63
    %p77 = scmp.eq.s32.totalorder %s17, 1
    %p78 = por %p76, %p77
    %p80 = scmp.ne.s32.totalorder %s63, %s79
    %p81 = scmp.eq.s32.totalorder %s17, 0
    %p82 = por %p80, %p81
    %s83 = ssub.s32 %s18, %s30
    %s84 = ssub.s32 %s19, %s26
    %s85 = sor.u32 %s83, %s84
    %p86 = scmp.eq.s32.totalorder %s85, 0
    %s88 = sadd.s32 %s87, 1
    %s89 = scalar_select %p86, %s87, %s88
    %p92 = pneg %p86
    %p93 = scmp.eq.s32.totalorder %s11, 1
    %p94 = por %p92, %p93
    %p95 = scmp.ne.s32.totalorder %s87, %s90
    %p96 = scmp.eq.s32.totalorder %s11, 0
    %p97 = por %p95, %p96
    %p98 = scmp.ne.s32.totalorder %s87, %s90
    %p99 = scmp.eq.s32.totalorder %s16, 1
    %p100 = por %p98, %p99
    %p101 = scmp.ne.s32.totalorder %s90, %s91
    %p102 = scmp.eq.s32.totalorder %s16, 0
    %p103 = por %p101, %p102
    %p104 = scmp.ne.s32.totalorder %s90, %s91
    %p105 = scmp.eq.s32.totalorder %s17, 1
    %p106 = por %p104, %p105
    %p108 = scmp.ne.s32.totalorder %s91, %s107
    %p109 = scmp.eq.s32.totalorder %s17, 0
    %p110 = por %p108, %p109
    %s111 = ssub.s32 %s18, %s30
    %s112 = ssub.s32 %s19, %s26
    %s113 = sor.u32 %s111, %s112
    %p114 = scmp.eq.s32.totalorder %s113, 0
    %s116 = sadd.s32 %s115, 1
    %s117 = scalar_select %p114, %s115, %s116
    %p120 = pneg %p114
    %p121 = scmp.eq.s32.totalorder %s11, 1
    %p122 = por %p120, %p121
    %p123 = scmp.ne.s32.totalorder %s115, %s118
    %p124 = scmp.eq.s32.totalorder %s11, 0
    %p125 = por %p123, %p124
    %p126 = scmp.ne.s32.totalorder %s115, %s118
    %p127 = scmp.eq.s32.totalorder %s16, 1
    %p128 = por %p126, %p127
    %p129 = scmp.ne.s32.totalorder %s118, %s119
    %p130 = scmp.eq.s32.totalorder %s16, 0
    %p131 = por %p129, %p130
    %p132 = scmp.ne.s32.totalorder %s118, %s119
    %p133 = scmp.eq.s32.totalorder %s17, 1
    %p134 = por %p132, %p133
    %p136 = scmp.ne.s32.totalorder %s119, %s135
    %p137 = scmp.eq.s32.totalorder %s17, 0
    %p138 = por %p136, %p137
    %s139 = ssub.s32 %s18, %s30
    %s140 = ssub.s32 %s19, %s26
    %s141 = sor.u32 %s139, %s140
    %p142 = scmp.eq.s32.totalorder %s141, 0
    %s144 = sadd.s32 %s143, 1
    %s145 = scalar_select %p142, %s143, %s144
    %p148 = pneg %p142
    %p149 = scmp.eq.s32.totalorder %s11, 1
    %p150 = por %p148, %p149
    %p151 = scmp.ne.s32.totalorder %s143, %s146
    %p152 = scmp.eq.s32.totalorder %s11, 0
    %p153 = por %p151, %p152
    %p154 = scmp.ne.s32.totalorder %s143, %s146
    %p155 = scmp.eq.s32.totalorder %s16, 1
    %p156 = por %p154, %p155
    %p157 = scmp.ne.s32.totalorder %s146, %s147
    %p158 = scmp.eq.s32.totalorder %s16, 0
    %p159 = por %p157, %p158
    %p160 = scmp.ne.s32.totalorder %s146, %s147
    %p161 = scmp.eq.s32.totalorder %s17, 1
    %p162 = por %p160, %p161
    %p164 = scmp.ne.s32.totalorder %s147, %s163
    %p165 = scmp.eq.s32.totalorder %s17, 0
    %p166 = por %p164, %p165
    %p167 = scmp.le.s32.totalorder 1, %s11
    %p168 = scmp.lt.s32.totalorder %s11, 3
    %p169 = pnand %p167, %p168
    %p170 = pneg %p169
    // Predicated region
    $region9: #{unet_skip_block_forward.4} parent=5 // pred_check
      _
    $region10: #{unet_skip_block_forward.4} parent=5 // pred_check_branch
      %172 = sbr.rel (%p169) target = $region12
    $region11: #{unet_skip_block_forward.4} parent=5 // pred_region
      %s173 = ssub.s32 %s11, 1
      // Predicated region
      $region13: #{unet_skip_block_forward.4} parent=11 // pred_check
        %p174 = pneg %p75
      $region14: #{unet_skip_block_forward.4} parent=11 // pred_check_branch
        %176 = sbr.rel (%p174) target = $region16
      $region15: #{unet_skip_block_forward.4} parent=11 // pred_region
        %p177 = scmp.lt.s32.totalorder %s21, 0
        %s178 = scalar_select %p177, %s21, 0
        %s179 = smul.addr %s178, 8
        %s180 = scalar_lea.vmem %s1, %s179
      $region16: #{unet_skip_block_forward.4} parent=11 // pred_fallthru
        _
    $region12: #{unet_skip_block_forward.4} parent=5 // pred_fallthru
      _
    %p181 = scmp.lt.s32.totalorder %s11, 2
    // Predicated region
    $region17: #{unet_skip_block_forward.4} parent=5 // pred_check
      %p182 = pneg %p181
    $region18: #{unet_skip_block_forward.4} parent=5 // pred_check_branch
      %184 = sbr.rel (%p182) target = $region20
    $region19: #{unet_skip_block_forward.4} parent=5 // pred_region
      // Predicated region
      $region21: #{unet_skip_block_forward.4} parent=19 // pred_check
        %p185 = pneg %p43
      $region22: #{unet_skip_block_forward.4} parent=19 // pred_check_branch
        %187 = sbr.rel (%p185) target = $region24
      $region23: #{unet_skip_block_forward.4} parent=19 // pred_region
        %p188 = scmp.lt.s32.totalorder %s18, 1
        %s189 = scalar_select %p188, %s18, 1
        %s190 = smul.addr %s189, 20
        %s191 = smul.addr %s190, 8
        %s192 = scalar_lea.vmem %s0, %s191
      $region24: #{unet_skip_block_forward.4} parent=19 // pred_fallthru
        _
    $region20: #{unet_skip_block_forward.4} parent=5 // pred_fallthru
      _
    %p193 = scmp.le.s32.totalorder 1, %s11
    %p194 = scmp.lt.s32.totalorder %s11, 3
    %p195 = pnand %p193, %p194
    %p196 = pneg %p195
    // Predicated region
    $region25: #{unet_skip_block_forward.4} parent=5 // pred_check
      _
    $region26: #{unet_skip_block_forward.4} parent=5 // pred_check_branch
      %198 = sbr.rel (%p195) target = $region28
    $region27: #{unet_skip_block_forward.4} parent=5 // pred_region
      %s199 = ssub.s32 %s11, 1
      %p200 = scmp.lt.s32.totalorder %s20, 1
      %s201 = scalar_select %p200, %s20, 1
      %s202 = smul.addr %s201, 20
      %s203 = smul.addr %s202, 8
      %s204 = scalar_lea.vmem %s0, %s203
      %p205 = pneg %p49
      %p206 = pneg %p46
      %p207 = scmp.lt.s32.totalorder %s21, 0
      %s208 = scalar_select %p207, %s21, 0
      %s209 = smul.addr %s208, 8
      %s210 = scalar_lea.vmem %s1, %s209
      %p211 = pneg %p75
      %p212 = pneg %p72
      %p213 = pneg %p103
      %p214 = pneg %p100
      %p215 = scmp.lt.s32.totalorder %s20, 1
      %s216 = scalar_select %p215, %s20, 1
      %p217 = scmp.lt.s32.totalorder %s21, 0
      %s218 = scalar_select %p217, %s21, 0
      %s219 = smul.addr %s216, 32
      %s220 = sadd.s32 %s218, %s219
      %s221 = smul.addr %s220, 8
      %s222 = scalar_lea.vmem %s2, %s221
      %p223 = pneg %p131
      %p224 = pneg %p128
      %p225 = scmp.lt.s32.totalorder %s20, 1
      %s226 = scalar_select %p225, %s20, 1
      %p227 = scmp.lt.s32.totalorder %s21, 0
      %s228 = scalar_select %p227, %s21, 0
      %s229 = sadd.s32 %s228, %s226
      %s230 = scalar_lea.vmem %s3, %s229
      %p231 = pneg %p159
      %p232 = pneg %p156
      %p233 = scmp.lt.s32.totalorder %s20, 1
      %s234 = scalar_select %p233, %s20, 1
      %p235 = scmp.lt.s32.totalorder %s21, 0
      %s236 = scalar_select %p235, %s21, 0
      %s237 = sadd.s32 %s236, %s234
      %s238 = scalar_lea.vmem %s4, %s237
      %p239 = scmp.lt.s32.totalorder %s20, 1
      %s240 = scalar_select %p239, %s20, 1
      %s241 = smul.addr %s240, 20
      %s242 = smul.addr %s241, 8
      %s243 = scalar_lea.vmem %s0, %s242
      %p244 = scmp.lt.s32.totalorder %s21, 0
      %s245 = scalar_select %p244, %s21, 0
      %s246 = smul.addr %s245, 8
      %s247 = scalar_lea.vmem %s1, %s246
      %p248 = scmp.lt.s32.totalorder %s20, 1
      %s249 = scalar_select %p248, %s20, 1
      %p250 = scmp.lt.s32.totalorder %s21, 0
      %s251 = scalar_select %p250, %s21, 0
      %s252 = smul.addr %s249, 32
      %s253 = sadd.s32 %s251, %s252
      %s254 = smul.addr %s253, 8
      %s255 = scalar_lea.vmem %s2, %s254
      %p256 = scmp.lt.s32.totalorder %s20, 1
      %s257 = scalar_select %p256, %s20, 1
      %p258 = scmp.lt.s32.totalorder %s21, 0
      %s259 = scalar_select %p258, %s21, 0
      %s260 = sadd.s32 %s259, %s257
      %s261 = scalar_lea.vmem %s3, %s260
      %p262 = scmp.lt.s32.totalorder %s20, 1
      %s263 = scalar_select %p262, %s20, 1
      %p264 = scmp.lt.s32.totalorder %s21, 0
      %s265 = scalar_select %p264, %s21, 0
      %s266 = sadd.s32 %s265, %s263
      %s267 = scalar_lea.vmem %s4, %s266
      %v268 = vld [vmem:[%s243] sm:$0xff]
      %v269 = vld [vmem:[%s243 + $0x8] sm:$0x3]
      %v270 = vld [vmem:[%s243 + $0x10] sm:$0xff]
      %v271 = vld [vmem:[%s243 + $0x18] sm:$0x3]
      %v272 = vld [vmem:[%s243 + $0x20] sm:$0xff]
      %v273 = vld [vmem:[%s243 + $0x28] sm:$0x3]
      %v274 = vld [vmem:[%s243 + $0x30] sm:$0xff]
      %v275 = vld [vmem:[%s243 + $0x38] sm:$0x3]
      %v276 = vld [vmem:[%s243 + $0x40] sm:$0xff]
      %v277 = vld [vmem:[%s243 + $0x48] sm:$0x3]
      %v278 = vld [vmem:[%s243 + $0x50] sm:$0xff]
      %v279 = vld [vmem:[%s243 + $0x58] sm:$0x3]
      %v280 = vld [vmem:[%s243 + $0x60] sm:$0xff]
      %v281 = vld [vmem:[%s243 + $0x68] sm:$0x3]
      %v282 = vld [vmem:[%s243 + $0x70] sm:$0xff]
      %v283 = vld [vmem:[%s243 + $0x78] sm:$0x3]
      %v284 = vld [vmem:[%s243 + $0x80] sm:$0xff]
      %v285 = vld [vmem:[%s243 + $0x88] sm:$0x3]
      %v286 = vld [vmem:[%s243 + $0x90] sm:$0xff]
      %v287 = vld [vmem:[%s243 + $0x98] sm:$0x3]
      %vm304 = vcmask 1046528
      %v305 = vrot.slane %v270, 1
      %v306 = vrot.slane %v271, 1
      %v307 = vsel %vm304, %v305, %v306
      %v308 = vrot.slane %v272, 1
      %v309 = vrot.slane %v273, 1
      %v310 = vsel %vm304, %v308, %v309
      %v311 = vrot.slane %v274, 1
      %v312 = vrot.slane %v275, 1
      %v313 = vsel %vm304, %v311, %v312
      %v314 = vrot.slane %v276, 1
      %v315 = vrot.slane %v277, 1
      %v316 = vsel %vm304, %v314, %v315
      %v317 = vrot.slane %v278, 1
      %v318 = vrot.slane %v279, 1
      %v319 = vsel %vm304, %v317, %v318
      %v320 = vrot.slane %v280, 1
      %v321 = vrot.slane %v281, 1
      %v322 = vsel %vm304, %v320, %v321
      %v323 = vrot.slane %v282, 1
      %v324 = vrot.slane %v283, 1
      %v325 = vsel %vm304, %v323, %v324
      %v326 = vrot.slane %v284, 1
      %v327 = vrot.slane %v285, 1
      %v328 = vsel %vm304, %v326, %v327
      %v339 = vrot.slane %v268, 1
      %v340 = vrot.slane %v269, 1
      %v341 = vsel %vm304, %v339, %v340
      %342 = vrot.lane.b32.xlu0 %v270, 8
      %v343 = vpop.permute.xlu0 %342
      %344 = vrot.lane.b32.xlu0 %v272, 8
      %v345 = vpop.permute.xlu0 %344
      %346 = vrot.lane.b32.xlu0 %v274, 8
      %v347 = vpop.permute.xlu0 %346
      %348 = vrot.lane.b32.xlu0 %v276, 8
      %v349 = vpop.permute.xlu0 %348
      %350 = vrot.lane.b32.xlu0 %v278, 8
      %v351 = vpop.permute.xlu0 %350
      %352 = vrot.lane.b32.xlu0 %v280, 8
      %v353 = vpop.permute.xlu0 %352
      %354 = vrot.lane.b32.xlu0 %v282, 8
      %v355 = vpop.permute.xlu0 %354
      %356 = vrot.lane.b32.xlu0 %v284, 8
      %v357 = vpop.permute.xlu0 %356
      %366 = vrot.lane.b32.xlu0 %v341, 16
      %v367 = vpop.permute.xlu0 %366
      %368 = vrot.lane.b32.xlu0 %v307, 16
      %v369 = vpop.permute.xlu0 %368
      %370 = vrot.lane.b32.xlu0 %v310, 16
      %v371 = vpop.permute.xlu0 %370
      %372 = vrot.lane.b32.xlu0 %v313, 16
      %v373 = vpop.permute.xlu0 %372
      %374 = vrot.lane.b32.xlu0 %v316, 16
      %v375 = vpop.permute.xlu0 %374
      %376 = vrot.lane.b32.xlu0 %v319, 16
      %v377 = vpop.permute.xlu0 %376
      %378 = vrot.lane.b32.xlu0 %v322, 16
      %v379 = vpop.permute.xlu0 %378
      %380 = vrot.lane.b32.xlu0 %v325, 16
      %v381 = vpop.permute.xlu0 %380
      %390 = vrot.lane.b32.xlu0 %v268, 24
      %v391 = vpop.permute.xlu0 %390
      %392 = vrot.lane.b32.xlu0 %v270, 24
      %v393 = vpop.permute.xlu0 %392
      %394 = vrot.lane.b32.xlu0 %v272, 24
      %v395 = vpop.permute.xlu0 %394
      %396 = vrot.lane.b32.xlu0 %v274, 24
      %v397 = vpop.permute.xlu0 %396
      %398 = vrot.lane.b32.xlu0 %v276, 24
      %v399 = vpop.permute.xlu0 %398
      %400 = vrot.lane.b32.xlu0 %v278, 24
      %v401 = vpop.permute.xlu0 %400
      %402 = vrot.lane.b32.xlu0 %v280, 24
      %v403 = vpop.permute.xlu0 %402
      %404 = vrot.lane.b32.xlu0 %v282, 24
      %v405 = vpop.permute.xlu0 %404
      %vm414 = vcmask 64512
      %v415 = vsel %vm414, %v307, %v343
      %v416 = vsel %vm414, %v310, %v345
      %v417 = vsel %vm414, %v313, %v347
      %v418 = vsel %vm414, %v316, %v349
      %v419 = vsel %vm414, %v319, %v351
      %v420 = vsel %vm414, %v322, %v353
      %v421 = vsel %vm414, %v325, %v355
      %v422 = vsel %vm414, %v328, %v357
      %vm423 = vcmask 130048
      %v424 = vsel %vm423, %v415, %v367
      %v425 = vsel %vm423, %v416, %v369
      %v426 = vsel %vm423, %v417, %v371
      %v427 = vsel %vm423, %v418, %v373
      %v428 = vsel %vm423, %v419, %v375
      %v429 = vsel %vm423, %v420, %v377
      %v430 = vsel %vm423, %v421, %v379
      %v431 = vsel %vm423, %v422, %v381
      %vm432 = vcmask 195584
      %v433 = vsel %vm432, %v424, %v391
      %v434 = vsel %vm432, %v425, %v393
      %v435 = vsel %vm432, %v426, %v395
      %v436 = vsel %vm432, %v427, %v397
      %v437 = vsel %vm432, %v428, %v399
      %v438 = vsel %vm432, %v429, %v401
      %v439 = vsel %vm432, %v430, %v403
      %v440 = vsel %vm432, %v431, %v405
      %v441 = vld [vmem:[%s247] sm:$0xff]
      %v442 = vld [vmem:[%s247 + $0x8] sm:$0xff]
      %v443 = vld [vmem:[%s247 + $0x10] sm:$0xff]
      %v444 = vld [vmem:[%s247 + $0x18] sm:$0xff]
      %vm445 = vcmask 261120
      %v447 = vsel %vm445, %v433, 0
      %v450 = vsel %vm445, %v434, 0
      %v453 = vsel %vm445, %v435, 0
      %v456 = vsel %vm445, %v436, 0
      %v459 = vsel %vm445, %v437, 0
      %v462 = vsel %vm445, %v438, 0
      %v465 = vsel %vm445, %v439, 0
      %v468 = vsel %vm445, %v440, 0
      %470 = vmatpush.msra.mxu0 0.0
      %471 = vmatpush.msra.mxu0 0.0
      %472 = vmatpush.msra.mxu0 0.0
      %473 = vmatpush.msra.mxu0 0.0
      %474 = vmatpush.msra.mxu0 0.0
      %475 = vmatpush.msra.mxu0 0.0
      %476 = vmatpush.msra.mxu0 0.0
      %477 = vmatpush.msra.mxu0 0.0
      %478 = vmatpush.msra.mxu0 0.0
      %479 = vmatpush.msra.mxu0 0.0
      %480 = vmatpush.msra.mxu0 0.0
      %481 = vmatpush.msra.mxu0 0.0
      %482 = vmatpush.msra.mxu0 %v444
      %483 = vmatpush.msra.mxu0 %v443
      %484 = vmatpush.msra.mxu0 %v442
      %485 = vmatpush.msra.mxu0 %v441
      %486 = vmatmul.f32.gmra.mxu0 %v447
      %v487 = vpop.f32.mrf.mxu0
      %v488 = vadd.f32 0.0, %v487
      %489 = vmatmul.f32.gmra.mxu0 %v450
      %v490 = vpop.f32.mrf.mxu0
      %v491 = vadd.f32 0.0, %v490
      %492 = vmatmul.f32.gmra.mxu0 %v453
      %v493 = vpop.f32.mrf.mxu0
      %v494 = vadd.f32 0.0, %v493
      %495 = vmatmul.f32.gmra.mxu0 %v456
      %v496 = vpop.f32.mrf.mxu0
      %v497 = vadd.f32 0.0, %v496
      %498 = vmatmul.f32.gmra.mxu0 %v459
      %v499 = vpop.f32.mrf.mxu0
      %v500 = vadd.f32 0.0, %v499
      %501 = vmatmul.f32.gmra.mxu0 %v462
      %v502 = vpop.f32.mrf.mxu0
      %v503 = vadd.f32 0.0, %v502
      %504 = vmatmul.f32.gmra.mxu0 %v465
      %v505 = vpop.f32.mrf.mxu0
      %v506 = vadd.f32 0.0, %v505
      %507 = vmatmul.f32.gmra.mxu0 %v468
      %v508 = vpop.f32.mrf.mxu0
      %v509 = vadd.f32 0.0, %v508
      %510 = vdwg.mxu0
      %511 = vst.msk [vmem:[%s255] sm:$0xff] %vm414, %v488
      %512 = vst.msk [vmem:[%s255 + $0x8] sm:$0xff] %vm414, %v491
      %513 = vst.msk [vmem:[%s255 + $0x10] sm:$0xff] %vm414, %v494
      %514 = vst.msk [vmem:[%s255 + $0x18] sm:$0xff] %vm414, %v497
      %515 = vst.msk [vmem:[%s255 + $0x20] sm:$0xff] %vm414, %v500
      %516 = vst.msk [vmem:[%s255 + $0x28] sm:$0xff] %vm414, %v503
      %517 = vst.msk [vmem:[%s255 + $0x30] sm:$0xff] %vm414, %v506
      %518 = vst.msk [vmem:[%s255 + $0x38] sm:$0xff] %vm414, %v509
      %v519 = vsel %vm414, %v488, 0.0
      %v520 = vsel %vm414, %v491, 0.0
      %v521 = vadd.f32 %v519, %v520
      %v522 = vsel %vm414, %v494, 0.0
      %v523 = vadd.f32 %v521, %v522
      %v524 = vsel %vm414, %v497, 0.0
      %v525 = vadd.f32 %v523, %v524
      %v526 = vsel %vm414, %v500, 0.0
      %v527 = vadd.f32 %v525, %v526
      %v528 = vsel %vm414, %v503, 0.0
      %v529 = vadd.f32 %v527, %v528
      %v530 = vsel %vm414, %v506, 0.0
      %v531 = vadd.f32 %v529, %v530
      %v532 = vsel %vm414, %v509, 0.0
      %v533 = vadd.f32 %v531, %v532
      %v534 = vrot.slane %v533, 4
      %v535 = vadd.f32 %v533, %v534
      %v536 = vrot.slane %v535, 2
      %v537 = vadd.f32 %v535, %v536
      %v538 = vrot.slane %v537, 1
      %v539 = vadd.f32 %v537, %v538
      %v540 = vadd.f32 %v539, 0.0
      %v541 = vmul.f32 %v488, %v488
      %v542 = vmul.f32 %v491, %v491
      %v543 = vmul.f32 %v494, %v494
      %v544 = vmul.f32 %v497, %v497
      %v545 = vmul.f32 %v500, %v500
      %v546 = vmul.f32 %v503, %v503
      %v547 = vmul.f32 %v506, %v506
      %v548 = vmul.f32 %v509, %v509
      %v549 = vsel %vm414, %v541, 0.0
      %v550 = vsel %vm414, %v542, 0.0
      %v551 = vadd.f32 %v549, %v550
      %v552 = vsel %vm414, %v543, 0.0
      %v553 = vadd.f32 %v551, %v552
      %v554 = vsel %vm414, %v544, 0.0
      %v555 = vadd.f32 %v553, %v554
      %v556 = vsel %vm414, %v545, 0.0
      %v557 = vadd.f32 %v555, %v556
      %v558 = vsel %vm414, %v546, 0.0
      %v559 = vadd.f32 %v557, %v558
      %v560 = vsel %vm414, %v547, 0.0
      %v561 = vadd.f32 %v559, %v560
      %v562 = vsel %vm414, %v548, 0.0
      %v563 = vadd.f32 %v561, %v562
      %v564 = vrot.slane %v563, 4
      %v565 = vadd.f32 %v563, %v564
      %v566 = vrot.slane %v565, 2
      %v567 = vadd.f32 %v565, %v566
      %v568 = vrot.slane %v567, 1
      %v569 = vadd.f32 %v567, %v568
      %v570 = vadd.f32 %v569, 0.0
      %vm571 = vcmask 1045504
      %v572 = vrot.slane %v270, 2
      %v573 = vrot.slane %v271, 2
      %v574 = vsel %vm571, %v572, %v573
      %v575 = vrot.slane %v272, 2
      %v576 = vrot.slane %v273, 2
      %v577 = vsel %vm571, %v575, %v576
      %v578 = vrot.slane %v274, 2
      %v579 = vrot.slane %v275, 2
      %v580 = vsel %vm571, %v578, %v579
      %v581 = vrot.slane %v276, 2
      %v582 = vrot.slane %v277, 2
      %v583 = vsel %vm571, %v581, %v582
      %v584 = vrot.slane %v278, 2
      %v585 = vrot.slane %v279, 2
      %v586 = vsel %vm571, %v584, %v585
      %v587 = vrot.slane %v280, 2
      %v588 = vrot.slane %v281, 2
      %v589 = vsel %vm571, %v587, %v588
      %v590 = vrot.slane %v282, 2
      %v591 = vrot.slane %v283, 2
      %v592 = vsel %vm571, %v590, %v591
      %v593 = vrot.slane %v284, 2
      %v594 = vrot.slane %v285, 2
      %v595 = vsel %vm571, %v593, %v594
      %v604 = vrot.slane %v268, 2
      %v605 = vrot.slane %v269, 2
      %v606 = vsel %vm571, %v604, %v605
      %607 = vrot.lane.b32.xlu0 %v307, 8
      %v608 = vpop.permute.xlu0 %607
      %609 = vrot.lane.b32.xlu0 %v310, 8
      %v610 = vpop.permute.xlu0 %609
      %611 = vrot.lane.b32.xlu0 %v313, 8
      %v612 = vpop.permute.xlu0 %611
      %613 = vrot.lane.b32.xlu0 %v316, 8
      %v614 = vpop.permute.xlu0 %613
      %615 = vrot.lane.b32.xlu0 %v319, 8
      %v616 = vpop.permute.xlu0 %615
      %617 = vrot.lane.b32.xlu0 %v322, 8
      %v618 = vpop.permute.xlu0 %617
      %619 = vrot.lane.b32.xlu0 %v325, 8
      %v620 = vpop.permute.xlu0 %619
      %621 = vrot.lane.b32.xlu0 %v328, 8
      %v622 = vpop.permute.xlu0 %621
      %631 = vrot.lane.b32.xlu0 %v606, 16
      %v632 = vpop.permute.xlu0 %631
      %633 = vrot.lane.b32.xlu0 %v574, 16
      %v634 = vpop.permute.xlu0 %633
      %635 = vrot.lane.b32.xlu0 %v577, 16
      %v636 = vpop.permute.xlu0 %635
      %637 = vrot.lane.b32.xlu0 %v580, 16
      %v638 = vpop.permute.xlu0 %637
      %639 = vrot.lane.b32.xlu0 %v583, 16
      %v640 = vpop.permute.xlu0 %639
      %641 = vrot.lane.b32.xlu0 %v586, 16
      %v642 = vpop.permute.xlu0 %641
      %643 = vrot.lane.b32.xlu0 %v589, 16
      %v644 = vpop.permute.xlu0 %643
      %645 = vrot.lane.b32.xlu0 %v592, 16
      %v646 = vpop.permute.xlu0 %645
      %655 = vrot.lane.b32.xlu0 %v341, 24
      %v656 = vpop.permute.xlu0 %655
      %657 = vrot.lane.b32.xlu0 %v307, 24
      %v658 = vpop.permute.xlu0 %657
      %659 = vrot.lane.b32.xlu0 %v310, 24
      %v660 = vpop.permute.xlu0 %659
      %661 = vrot.lane.b32.xlu0 %v313, 24
      %v662 = vpop.permute.xlu0 %661
      %663 = vrot.lane.b32.xlu0 %v316, 24
      %v664 = vpop.permute.xlu0 %663
      %665 = vrot.lane.b32.xlu0 %v319, 24
      %v666 = vpop.permute.xlu0 %665
      %667 = vrot.lane.b32.xlu0 %v322, 24
      %v668 = vpop.permute.xlu0 %667
      %669 = vrot.lane.b32.xlu0 %v325, 24
      %v670 = vpop.permute.xlu0 %669
      %v679 = vsel %vm414, %v574, %v608
      %v680 = vsel %vm414, %v577, %v610
      %v681 = vsel %vm414, %v580, %v612
      %v682 = vsel %vm414, %v583, %v614
      %v683 = vsel %vm414, %v586, %v616
      %v684 = vsel %vm414, %v589, %v618
      %v685 = vsel %vm414, %v592, %v620
      %v686 = vsel %vm414, %v595, %v622
      %v687 = vsel %vm423, %v679, %v632
      %v688 = vsel %vm423, %v680, %v634
      %v689 = vsel %vm423, %v681, %v636
      %v690 = vsel %vm423, %v682, %v638
      %v691 = vsel %vm423, %v683, %v640
      %v692 = vsel %vm423, %v684, %v642
      %v693 = vsel %vm423, %v685, %v644
      %v694 = vsel %vm423, %v686, %v646
      %v695 = vsel %vm432, %v687, %v656
      %v696 = vsel %vm432, %v688, %v658
      %v697 = vsel %vm432, %v689, %v660
      %v698 = vsel %vm432, %v690, %v662
      %v699 = vsel %vm432, %v691, %v664
      %v700 = vsel %vm432, %v692, %v666
      %v701 = vsel %vm432, %v693, %v668
      %v702 = vsel %vm432, %v694, %v670
      %s703 = scalar_lea.vmem %s247, 32
      %v704 = vld [vmem:[%s703] sm:$0xff]
      %v705 = vld [vmem:[%s703 + $0x8] sm:$0xff]
      %v706 = vld [vmem:[%s703 + $0x10] sm:$0xff]
      %v707 = vld [vmem:[%s703 + $0x18] sm:$0xff]
      %v709 = vsel %vm445, %v695, 0
      %v712 = vsel %vm445, %v696, 0
      %v715 = vsel %vm445, %v697, 0
      %v718 = vsel %vm445, %v698, 0
      %v721 = vsel %vm445, %v699, 0
      %v724 = vsel %vm445, %v700, 0
      %v727 = vsel %vm445, %v701, 0
      %v730 = vsel %vm445, %v702, 0
      %732 = vmatpush.msra.mxu0 0.0
      %733 = vmatpush.msra.mxu0 0.0
      %734 = vmatpush.msra.mxu0 0.0
      %735 = vmatpush.msra.mxu0 0.0
      %736 = vmatpush.msra.mxu0 0.0
      %737 = vmatpush.msra.mxu0 0.0
      %738 = vmatpush.msra.mxu0 0.0
      %739 = vmatpush.msra.mxu0 0.0
      %740 = vmatpush.msra.mxu0 0.0
      %741 = vmatpush.msra.mxu0 0.0
      %742 = vmatpush.msra.mxu0 0.0
      %743 = vmatpush.msra.mxu0 0.0
      %744 = vmatpush.msra.mxu0 %v707
      %745 = vmatpush.msra.mxu0 %v706
      %746 = vmatpush.msra.mxu0 %v705
      %747 = vmatpush.msra.mxu0 %v704
      %748 = vmatmul.f32.gmra.mxu0 %v709
      %v749 = vpop.f32.mrf.mxu0
      %v750 = vadd.f32 0.0, %v749
      %751 = vmatmul.f32.gmra.mxu0 %v712
      %v752 = vpop.f32.mrf.mxu0
      %v753 = vadd.f32 0.0, %v752
      %754 = vmatmul.f32.gmra.mxu0 %v715
      %v755 = vpop.f32.mrf.mxu0
      %v756 = vadd.f32 0.0, %v755
      %757 = vmatmul.f32.gmra.mxu0 %v718
      %v758 = vpop.f32.mrf.mxu0
      %v759 = vadd.f32 0.0, %v758
      %760 = vmatmul.f32.gmra.mxu0 %v721
      %v761 = vpop.f32.mrf.mxu0
      %v762 = vadd.f32 0.0, %v761
      %763 = vmatmul.f32.gmra.mxu0 %v724
      %v764 = vpop.f32.mrf.mxu0
      %v765 = vadd.f32 0.0, %v764
      %766 = vmatmul.f32.gmra.mxu0 %v727
      %v767 = vpop.f32.mrf.mxu0
      %v768 = vadd.f32 0.0, %v767
      %769 = vmatmul.f32.gmra.mxu0 %v730
      %v770 = vpop.f32.mrf.mxu0
      %v771 = vadd.f32 0.0, %v770
      %772 = vdwg.mxu0
      %s773 = scalar_lea.vmem %s255, 64
      %774 = vst.msk [vmem:[%s773] sm:$0xff] %vm414, %v750
      %775 = vst.msk [vmem:[%s773 + $0x8] sm:$0xff] %vm414, %v753
      %776 = vst.msk [vmem:[%s773 + $0x10] sm:$0xff] %vm414, %v756
      %777 = vst.msk [vmem:[%s773 + $0x18] sm:$0xff] %vm414, %v759
      %778 = vst.msk [vmem:[%s773 + $0x20] sm:$0xff] %vm414, %v762
      %779 = vst.msk [vmem:[%s773 + $0x28] sm:$0xff] %vm414, %v765
      %780 = vst.msk [vmem:[%s773 + $0x30] sm:$0xff] %vm414, %v768
      %781 = vst.msk [vmem:[%s773 + $0x38] sm:$0xff] %vm414, %v771
      %v782 = vsel %vm414, %v750, 0.0
      %v783 = vsel %vm414, %v753, 0.0
      %v784 = vadd.f32 %v782, %v783
      %v785 = vsel %vm414, %v756, 0.0
      %v786 = vadd.f32 %v784, %v785
      %v787 = vsel %vm414, %v759, 0.0
      %v788 = vadd.f32 %v786, %v787
      %v789 = vsel %vm414, %v762, 0.0
      %v790 = vadd.f32 %v788, %v789
      %v791 = vsel %vm414, %v765, 0.0
      %v792 = vadd.f32 %v790, %v791
      %v793 = vsel %vm414, %v768, 0.0
      %v794 = vadd.f32 %v792, %v793
      %v795 = vsel %vm414, %v771, 0.0
      %v796 = vadd.f32 %v794, %v795
      %v797 = vrot.slane %v796, 4
      %v798 = vadd.f32 %v796, %v797
      %v799 = vrot.slane %v798, 2
      %v800 = vadd.f32 %v798, %v799
      %v801 = vrot.slane %v800, 1
      %v802 = vadd.f32 %v800, %v801
      %v803 = vadd.f32 %v540, %v802
      %v804 = vmul.f32 %v750, %v750
      %v805 = vmul.f32 %v753, %v753
      %v806 = vmul.f32 %v756, %v756
      %v807 = vmul.f32 %v759, %v759
      %v808 = vmul.f32 %v762, %v762
      %v809 = vmul.f32 %v765, %v765
      %v810 = vmul.f32 %v768, %v768
      %v811 = vmul.f32 %v771, %v771
      %v812 = vsel %vm414, %v804, 0.0
      %v813 = vsel %vm414, %v805, 0.0
      %v814 = vadd.f32 %v812, %v813
      %v815 = vsel %vm414, %v806, 0.0
      %v816 = vadd.f32 %v814, %v815
      %v817 = vsel %vm414, %v807, 0.0
      %v818 = vadd.f32 %v816, %v817
      %v819 = vsel %vm414, %v808, 0.0
      %v820 = vadd.f32 %v818, %v819
      %v821 = vsel %vm414, %v809, 0.0
      %v822 = vadd.f32 %v820, %v821
      %v823 = vsel %vm414, %v810, 0.0
      %v824 = vadd.f32 %v822, %v823
      %v825 = vsel %vm414, %v811, 0.0
      %v826 = vadd.f32 %v824, %v825
      %v827 = vrot.slane %v826, 4
      %v828 = vadd.f32 %v826, %v827
      %v829 = vrot.slane %v828, 2
      %v830 = vadd.f32 %v828, %v829
      %v831 = vrot.slane %v830, 1
      %v832 = vadd.f32 %v830, %v831
      %v833 = vadd.f32 %v570, %v832
      %v836 = vrot.slane %v286, 1
      %v837 = vrot.slane %v287, 1
      %v838 = vsel %vm304, %v836, %v837
      %840 = vrot.lane.b32.xlu0 %v286, 8
      %v841 = vpop.permute.xlu0 %840
      %843 = vrot.lane.b32.xlu0 %v328, 16
      %v844 = vpop.permute.xlu0 %843
      %846 = vrot.lane.b32.xlu0 %v284, 24
      %v847 = vpop.permute.xlu0 %846
      %v849 = vsel %vm414, %v838, %v841
      %v850 = vsel %vm423, %v849, %v844
      %v851 = vsel %vm432, %v850, %v847
      %s852 = scalar_lea.vmem %s247, 64
      %v853 = vld [vmem:[%s852] sm:$0xff]
      %v854 = vld [vmem:[%s852 + $0x8] sm:$0xff]
      %v855 = vld [vmem:[%s852 + $0x10] sm:$0xff]
      %v856 = vld [vmem:[%s852 + $0x18] sm:$0xff]
      %v858 = vsel %vm445, %v851, 0
      %860 = vmatpush.msra.mxu0 0.0
      %861 = vmatpush.msra.mxu0 0.0
      %862 = vmatpush.msra.mxu0 0.0
      %863 = vmatpush.msra.mxu0 0.0
      %864 = vmatpush.msra.mxu0 0.0
      %865 = vmatpush.msra.mxu0 0.0
      %866 = vmatpush.msra.mxu0 0.0
      %867 = vmatpush.msra.mxu0 0.0
      %868 = vmatpush.msra.mxu0 0.0
      %869 = vmatpush.msra.mxu0 0.0
      %870 = vmatpush.msra.mxu0 0.0
      %871 = vmatpush.msra.mxu0 0.0
      %872 = vmatpush.msra.mxu0 %v856
      %873 = vmatpush.msra.mxu0 %v855
      %874 = vmatpush.msra.mxu0 %v854
      %875 = vmatpush.msra.mxu0 %v853
      %876 = vmatmul.f32.gmra.mxu0 %v450
      %v877 = vpop.f32.mrf.mxu0
      %v878 = vadd.f32 0.0, %v877
      %879 = vmatmul.f32.gmra.mxu0 %v453
      %v880 = vpop.f32.mrf.mxu0
      %v881 = vadd.f32 0.0, %v880
      %882 = vmatmul.f32.gmra.mxu0 %v456
      %v883 = vpop.f32.mrf.mxu0
      %v884 = vadd.f32 0.0, %v883
      %885 = vmatmul.f32.gmra.mxu0 %v459
      %v886 = vpop.f32.mrf.mxu0
      %v887 = vadd.f32 0.0, %v886
      %888 = vmatmul.f32.gmra.mxu0 %v462
      %v889 = vpop.f32.mrf.mxu0
      %v890 = vadd.f32 0.0, %v889
      %891 = vmatmul.f32.gmra.mxu0 %v465
      %v892 = vpop.f32.mrf.mxu0
      %v893 = vadd.f32 0.0, %v892
      %894 = vmatmul.f32.gmra.mxu0 %v468
      %v895 = vpop.f32.mrf.mxu0
      %v896 = vadd.f32 0.0, %v895
      %897 = vmatmul.f32.gmra.mxu0 %v858
      %v898 = vpop.f32.mrf.mxu0
      %v899 = vadd.f32 0.0, %v898
      %900 = vdwg.mxu0
      %s901 = scalar_lea.vmem %s255, 128
      %902 = vst.msk [vmem:[%s901] sm:$0xff] %vm414, %v878
      %903 = vst.msk [vmem:[%s901 + $0x8] sm:$0xff] %vm414, %v881
      %904 = vst.msk [vmem:[%s901 + $0x10] sm:$0xff] %vm414, %v884
      %905 = vst.msk [vmem:[%s901 + $0x18] sm:$0xff] %vm414, %v887
      %906 = vst.msk [vmem:[%s901 + $0x20] sm:$0xff] %vm414, %v890
      %907 = vst.msk [vmem:[%s901 + $0x28] sm:$0xff] %vm414, %v893
      %908 = vst.msk [vmem:[%s901 + $0x30] sm:$0xff] %vm414, %v896
      %909 = vst.msk [vmem:[%s901 + $0x38] sm:$0xff] %vm414, %v899
      %v910 = vsel %vm414, %v878, 0.0
      %v911 = vsel %vm414, %v881, 0.0
      %v912 = vadd.f32 %v910, %v911
      %v913 = vsel %vm414, %v884, 0.0
      %v914 = vadd.f32 %v912, %v913
      %v915 = vsel %vm414, %v887, 0.0
      %v916 = vadd.f32 %v914, %v915
      %v917 = vsel %vm414, %v890, 0.0
      %v918 = vadd.f32 %v916, %v917
      %v919 = vsel %vm414, %v893, 0.0
      %v920 = vadd.f32 %v918, %v919
      %v921 = vsel %vm414, %v896, 0.0
      %v922 = vadd.f32 %v920, %v921
      %v923 = vsel %vm414, %v899, 0.0
      %v924 = vadd.f32 %v922, %v923
      %v925 = vrot.slane %v924, 4
      %v926 = vadd.f32 %v924, %v925
      %v927 = vrot.slane %v926, 2
      %v928 = vadd.f32 %v926, %v927
      %v929 = vrot.slane %v928, 1
      %v930 = vadd.f32 %v928, %v929
      %v931 = vadd.f32 %v803, %v930
      %v932 = vmul.f32 %v878, %v878
      %v933 = vmul.f32 %v881, %v881
      %v934 = vmul.f32 %v884, %v884
      %v935 = vmul.f32 %v887, %v887
      %v936 = vmul.f32 %v890, %v890
      %v937 = vmul.f32 %v893, %v893
      %v938 = vmul.f32 %v896, %v896
      %v939 = vmul.f32 %v899, %v899
      %v940 = vsel %vm414, %v932, 0.0
      %v941 = vsel %vm414, %v933, 0.0
      %v942 = vadd.f32 %v940, %v941
      %v943 = vsel %vm414, %v934, 0.0
      %v944 = vadd.f32 %v942, %v943
      %v945 = vsel %vm414, %v935, 0.0
      %v946 = vadd.f32 %v944, %v945
      %v947 = vsel %vm414, %v936, 0.0
      %v948 = vadd.f32 %v946, %v947
      %v949 = vsel %vm414, %v937, 0.0
      %v950 = vadd.f32 %v948, %v949
      %v951 = vsel %vm414, %v938, 0.0
      %v952 = vadd.f32 %v950, %v951
      %v953 = vsel %vm414, %v939, 0.0
      %v954 = vadd.f32 %v952, %v953
      %v955 = vrot.slane %v954, 4
      %v956 = vadd.f32 %v954, %v955
      %v957 = vrot.slane %v956, 2
      %v958 = vadd.f32 %v956, %v957
      %v959 = vrot.slane %v958, 1
      %v960 = vadd.f32 %v958, %v959
      %v961 = vadd.f32 %v833, %v960
      %v962 = vrot.slane %v286, 2
      %v963 = vrot.slane %v287, 2
      %v964 = vsel %vm571, %v962, %v963
      %966 = vrot.lane.b32.xlu0 %v838, 8
      %v967 = vpop.permute.xlu0 %966
      %969 = vrot.lane.b32.xlu0 %v595, 16
      %v970 = vpop.permute.xlu0 %969
      %972 = vrot.lane.b32.xlu0 %v328, 24
      %v973 = vpop.permute.xlu0 %972
      %v975 = vsel %vm414, %v964, %v967
      %v976 = vsel %vm423, %v975, %v970
      %v977 = vsel %vm432, %v976, %v973
      %s978 = scalar_lea.vmem %s247, 96
      %v979 = vld [vmem:[%s978] sm:$0xff]
      %v980 = vld [vmem:[%s978 + $0x8] sm:$0xff]
      %v981 = vld [vmem:[%s978 + $0x10] sm:$0xff]
      %v982 = vld [vmem:[%s978 + $0x18] sm:$0xff]
      %v984 = vsel %vm445, %v977, 0
      %986 = vmatpush.msra.mxu0 0.0
      %987 = vmatpush.msra.mxu0 0.0
      %988 = vmatpush.msra.mxu0 0.0
      %989 = vmatpush.msra.mxu0 0.0
      %990 = vmatpush.msra.mxu0 0.0
      %991 = vmatpush.msra.mxu0 0.0
      %992 = vmatpush.msra.mxu0 0.0
      %993 = vmatpush.msra.mxu0 0.0
      %994 = vmatpush.msra.mxu0 0.0
      %995 = vmatpush.msra.mxu0 0.0
      %996 = vmatpush.msra.mxu0 0.0
      %997 = vmatpush.msra.mxu0 0.0
      %998 = vmatpush.msra.mxu0 %v982
      %999 = vmatpush.msra.mxu0 %v981
      %1000 = vmatpush.msra.mxu0 %v980
      %1001 = vmatpush.msra.mxu0 %v979
      %1002 = vmatmul.f32.gmra.mxu0 %v712
      %v1003 = vpop.f32.mrf.mxu0
      %v1004 = vadd.f32 0.0, %v1003
      %1005 = vmatmul.f32.gmra.mxu0 %v715
      %v1006 = vpop.f32.mrf.mxu0
      %v1007 = vadd.f32 0.0, %v1006
      %1008 = vmatmul.f32.gmra.mxu0 %v718
      %v1009 = vpop.f32.mrf.mxu0
      %v1010 = vadd.f32 0.0, %v1009
      %1011 = vmatmul.f32.gmra.mxu0 %v721
      %v1012 = vpop.f32.mrf.mxu0
      %v1013 = vadd.f32 0.0, %v1012
      %1014 = vmatmul.f32.gmra.mxu0 %v724
      %v1015 = vpop.f32.mrf.mxu0
      %v1016 = vadd.f32 0.0, %v1015
      %1017 = vmatmul.f32.gmra.mxu0 %v727
      %v1018 = vpop.f32.mrf.mxu0
      %v1019 = vadd.f32 0.0, %v1018
      %1020 = vmatmul.f32.gmra.mxu0 %v730
      %v1021 = vpop.f32.mrf.mxu0
      %v1022 = vadd.f32 0.0, %v1021
      %1023 = vmatmul.f32.gmra.mxu0 %v984
      %v1024 = vpop.f32.mrf.mxu0
      %v1025 = vadd.f32 0.0, %v1024
      %1026 = vdwg.mxu0
      %s1027 = scalar_lea.vmem %s255, 192
      %1028 = vst.msk [vmem:[%s1027] sm:$0xff] %vm414, %v1004
      %1029 = vst.msk [vmem:[%s1027 + $0x8] sm:$0xff] %vm414, %v1007
      %1030 = vst.msk [vmem:[%s1027 + $0x10] sm:$0xff] %vm414, %v1010
      %1031 = vst.msk [vmem:[%s1027 + $0x18] sm:$0xff] %vm414, %v1013
      %1032 = vst.msk [vmem:[%s1027 + $0x20] sm:$0xff] %vm414, %v1016
      %1033 = vst.msk [vmem:[%s1027 + $0x28] sm:$0xff] %vm414, %v1019
      %1034 = vst.msk [vmem:[%s1027 + $0x30] sm:$0xff] %vm414, %v1022
      %1035 = vst.msk [vmem:[%s1027 + $0x38] sm:$0xff] %vm414, %v1025
      %v1036 = vsel %vm414, %v1004, 0.0
      %v1037 = vsel %vm414, %v1007, 0.0
      %v1038 = vadd.f32 %v1036, %v1037
      %v1039 = vsel %vm414, %v1010, 0.0
      %v1040 = vadd.f32 %v1038, %v1039
      %v1041 = vsel %vm414, %v1013, 0.0
      %v1042 = vadd.f32 %v1040, %v1041
      %v1043 = vsel %vm414, %v1016, 0.0
      %v1044 = vadd.f32 %v1042, %v1043
      %v1045 = vsel %vm414, %v1019, 0.0
      %v1046 = vadd.f32 %v1044, %v1045
      %v1047 = vsel %vm414, %v1022, 0.0
      %v1048 = vadd.f32 %v1046, %v1047
      %v1049 = vsel %vm414, %v1025, 0.0
      %v1050 = vadd.f32 %v1048, %v1049
      %v1051 = vrot.slane %v1050, 4
      %v1052 = vadd.f32 %v1050, %v1051
      %v1053 = vrot.slane %v1052, 2
      %v1054 = vadd.f32 %v1052, %v1053
      %v1055 = vrot.slane %v1054, 1
      %v1056 = vadd.f32 %v1054, %v1055
      %v1057 = vadd.f32 %v931, %v1056
      %v1058 = vmul.f32 %v1004, %v1004
      %v1059 = vmul.f32 %v1007, %v1007
      %v1060 = vmul.f32 %v1010, %v1010
      %v1061 = vmul.f32 %v1013, %v1013
      %v1062 = vmul.f32 %v1016, %v1016
      %v1063 = vmul.f32 %v1019, %v1019
      %v1064 = vmul.f32 %v1022, %v1022
      %v1065 = vmul.f32 %v1025, %v1025
      %v1066 = vsel %vm414, %v1058, 0.0
      %v1067 = vsel %vm414, %v1059, 0.0
      %v1068 = vadd.f32 %v1066, %v1067
      %v1069 = vsel %vm414, %v1060, 0.0
      %v1070 = vadd.f32 %v1068, %v1069
      %v1071 = vsel %vm414, %v1061, 0.0
      %v1072 = vadd.f32 %v1070, %v1071
      %v1073 = vsel %vm414, %v1062, 0.0
      %v1074 = vadd.f32 %v1072, %v1073
      %v1075 = vsel %vm414, %v1063, 0.0
      %v1076 = vadd.f32 %v1074, %v1075
      %v1077 = vsel %vm414, %v1064, 0.0
      %v1078 = vadd.f32 %v1076, %v1077
      %v1079 = vsel %vm414, %v1065, 0.0
      %v1080 = vadd.f32 %v1078, %v1079
      %v1081 = vrot.slane %v1080, 4
      %v1082 = vadd.f32 %v1080, %v1081
      %v1083 = vrot.slane %v1082, 2
      %v1084 = vadd.f32 %v1082, %v1083
      %v1085 = vrot.slane %v1084, 1
      %v1086 = vadd.f32 %v1084, %v1085
      %v1087 = vadd.f32 %v961, %v1086
      %vm1088 = vcmask 57344
      %1089 = vst.msk [vmem:[%s261] sm:$0x1] %vm1088, %v1057
      %1090 = vst.msk [vmem:[%s267] sm:$0x1] %vm1088, %v1087
      %p1091 = scmp.lt.s32.totalorder %s20, 1
      %s1092 = scalar_select %p1091, %s20, 1
      %p1093 = scmp.lt.s32.totalorder %s21, 0
      %s1094 = scalar_select %p1093, %s21, 0
      %s1095 = smul.addr %s1092, 32
      %s1096 = sadd.s32 %s1094, %s1095
      %s1097 = smul.addr %s1096, 8
      %s1098 = scalar_lea.vmem %s2, %s1097
      %p1099 = scmp.lt.s32.totalorder %s20, 1
      %s1100 = scalar_select %p1099, %s20, 1
      %p1101 = scmp.lt.s32.totalorder %s21, 0
      %s1102 = scalar_select %p1101, %s21, 0
      %s1103 = sadd.s32 %s1102, %s1100
      %s1104 = scalar_lea.vmem %s3, %s1103
      %p1105 = scmp.lt.s32.totalorder %s20, 1
      %s1106 = scalar_select %p1105, %s20, 1
      %p1107 = scmp.lt.s32.totalorder %s21, 0
      %s1108 = scalar_select %p1107, %s21, 0
      %s1109 = sadd.s32 %s1108, %s1106
      %s1110 = scalar_lea.vmem %s4, %s1109
      // Predicated region
      $region29: #{unet_skip_block_forward.4} parent=27 // pred_check
        %p1111 = pneg %p100
      $region30: #{unet_skip_block_forward.4} parent=27 // pred_check_branch
        %1113 = sbr.rel (%p1111) target = $region32
      $region31: #{unet_skip_block_forward.4} parent=27 // pred_region
        _
      $region32: #{unet_skip_block_forward.4} parent=27 // pred_fallthru
        _
      // Predicated region
      $region33: #{unet_skip_block_forward.4} parent=27 // pred_check
        %p1114 = pneg %p128
      $region34: #{unet_skip_block_forward.4} parent=27 // pred_check_branch
        %1116 = sbr.rel (%p1114) target = $region36
      $region35: #{unet_skip_block_forward.4} parent=27 // pred_region
        _
      $region36: #{unet_skip_block_forward.4} parent=27 // pred_fallthru
        _
      // Predicated region
      $region37: #{unet_skip_block_forward.4} parent=27 // pred_check
        %p1117 = pneg %p156
      $region38: #{unet_skip_block_forward.4} parent=27 // pred_check_branch
        %1119 = sbr.rel (%p1117) target = $region40
      $region39: #{unet_skip_block_forward.4} parent=27 // pred_region
        _
      $region40: #{unet_skip_block_forward.4} parent=27 // pred_fallthru
        _
    $region28: #{unet_skip_block_forward.4} parent=5 // pred_fallthru
      _
    %p1120 = scmp.le.s32.totalorder 2, %s11
    // Predicated region
    $region41: #{unet_skip_block_forward.4} parent=5 // pred_check
      %p1121 = pneg %p1120
    $region42: #{unet_skip_block_forward.4} parent=5 // pred_check_branch
      %1123 = sbr.rel (%p1121) target = $region44
    $region43: #{unet_skip_block_forward.4} parent=5 // pred_region
      %s1124 = ssub.s32 %s11, 2
      // Predicated region
      $region45: #{unet_skip_block_forward.4} parent=43 // pred_check
        %p1125 = pneg %p106
      $region46: #{unet_skip_block_forward.4} parent=43 // pred_check_branch
        %1127 = sbr.rel (%p1125) target = $region48
      $region47: #{unet_skip_block_forward.4} parent=43 // pred_region
        %p1128 = scmp.lt.s32.totalorder %s22, 1
        %s1129 = scalar_select %p1128, %s22, 1
        %p1130 = scmp.lt.s32.totalorder %s23, 0
        %s1131 = scalar_select %p1130, %s23, 0
        %s1132 = smul.addr %s1129, 32
        %s1133 = sadd.s32 %s1131, %s1132
        %s1134 = smul.addr %s1133, 8
        %s1135 = scalar_lea.vmem %s2, %s1134
      $region48: #{unet_skip_block_forward.4} parent=43 // pred_fallthru
        _
      // Predicated region
      $region49: #{unet_skip_block_forward.4} parent=43 // pred_check
        %p1136 = pneg %p134
      $region50: #{unet_skip_block_forward.4} parent=43 // pred_check_branch
        %1138 = sbr.rel (%p1136) target = $region52
      $region51: #{unet_skip_block_forward.4} parent=43 // pred_region
        %p1139 = scmp.lt.s32.totalorder %s22, 1
        %s1140 = scalar_select %p1139, %s22, 1
        %p1141 = scmp.lt.s32.totalorder %s23, 0
        %s1142 = scalar_select %p1141, %s23, 0
        %s1143 = sadd.s32 %s1142, %s1140
        %s1144 = scalar_lea.vmem %s3, %s1143
      $region52: #{unet_skip_block_forward.4} parent=43 // pred_fallthru
        _
      // Predicated region
      $region53: #{unet_skip_block_forward.4} parent=43 // pred_check
        %p1145 = pneg %p162
      $region54: #{unet_skip_block_forward.4} parent=43 // pred_check_branch
        %1147 = sbr.rel (%p1145) target = $region56
      $region55: #{unet_skip_block_forward.4} parent=43 // pred_region
        %p1148 = scmp.lt.s32.totalorder %s22, 1
        %s1149 = scalar_select %p1148, %s22, 1
        %p1150 = scmp.lt.s32.totalorder %s23, 0
        %s1151 = scalar_select %p1150, %s23, 0
        %s1152 = sadd.s32 %s1151, %s1149
        %s1153 = scalar_lea.vmem %s4, %s1152
      $region56: #{unet_skip_block_forward.4} parent=43 // pred_fallthru
        _
    $region44: #{unet_skip_block_forward.4} parent=5 // pred_fallthru
      _
  $region6: #{unet_skip_block_forward.4} parent=0 // loop_footer
    %s15 = sadd.s32 1, %s11
  $region7: #{unet_skip_block_forward.4} parent=0 // loop_footer_branch
    %10 = sbr.rel target = $region3
  $region8: #{unet_skip_block_forward.4} parent=0 // loop_exit
    _

// kernel: unet_skip_block_forward.5
$region0: #{unet_skip_block_forward.5}
  #allocation0 [shape = 'u32[]', space=smem, size = 0x4, offset = 0x4, fixed_abs, tag = 'smem constant byte address 0x4 - core index']
  #allocation1 [shape = 'u32[72,128]{1,0:T(1,128)}', space=vmem, size = 0x9000, scoped, tag = 'internal scratch']
  %s0 = inlined_call_operand.vmem [shape: f32[2,2,2,8,8,8], index: 0, kind: input, shape index: {}]
  %s1 = inlined_call_operand.vmem [shape: f32[1,8], index: 1, kind: input, shape index: {}]
  %s2 = inlined_call_operand.vmem [shape: f32[1,8], index: 2, kind: input, shape index: {}]
  %s3 = inlined_call_operand.vmem [shape: f32[2,2,2,8,8,8], index: 3, kind: output, shape index: {}]
  %s4 = sld [smem:[#allocation0]]
  $region45: #{unet_skip_block_forward.5} parent=0
    _
  %s6 = ssub.s32 1, %s4
  %s7 = scalar_select 0, %s6, %s4
  loop: start=0, step=1, limit=4
  $region2: #{unet_skip_block_forward.5} parent=0 // loop_pre_header
    _
  $region3: #{unet_skip_block_forward.5} parent=0 // loop_header
    %s9 = sphi 0, %s13
    %p10 = scmp.ge.s32.totalorder %s9, 4
    %s16 = sphi 0, %s28
    %s17 = sphi 0, %s24
    %s18 = sphi 0, %s16
    %s19 = sphi 0, %s17
    %s20 = sphi 0, %s18
    %s21 = sphi 0, %s19
    %s33 = sphi 0, %s35
    %s36 = sphi 0, %s33
    %s37 = sphi 0, %s36
    %s53 = sphi 0, %s37
    %s59 = sphi 0, %s61
    %s62 = sphi 0, %s59
    %s63 = sphi 0, %s62
    %s79 = sphi 0, %s63
    %s85 = sphi 0, %s87
    %s88 = sphi 0, %s85
    %s89 = sphi 0, %s88
    %s105 = sphi 0, %s89
    %s113 = sphi 0, %s115
    %s116 = sphi 0, %s113
    %s117 = sphi 0, %s116
    %s133 = sphi 0, %s117
  $region4: #{unet_skip_block_forward.5} parent=0 // loop_header_branch
    %12 = sbr.rel (%p10) target = $region8
  $region5: #{unet_skip_block_forward.5} parent=0 // loop_body
    %s14 = ssub.s32 %s9, 1
    %s15 = ssub.s32 %s9, 2
    %s22 = sadd.s32 1, %s17
    %p23 = scmp.ge.s32.totalorder %s22, 1
    %s24 = scalar_select %p23, 0, %s22
    %s25 = sadd.s32 1, %s16
    %s26 = scalar_select %p23, %s25, %s16
    %p27 = scmp.ge.s32.totalorder %s26, 2
    %s28 = scalar_select %p27, 0, %s26
    %s29 = ssub.s32 %s16, %s28
    %s30 = ssub.s32 %s17, %s24
    %s31 = sor.u32 %s29, %s30
    %p32 = scmp.eq.s32.totalorder %s31, 0
    %s34 = sadd.s32 %s33, 1
    %s35 = scalar_select %p32, %s33, %s34
    %p38 = pneg %p32
    %p39 = scmp.eq.s32.totalorder %s9, 1
    %p40 = por %p38, %p39
    %p41 = scmp.ne.s32.totalorder %s33, %s36
    %p42 = scmp.eq.s32.totalorder %s9, 0
    %p43 = por %p41, %p42
    %p44 = scmp.ne.s32.totalorder %s33, %s36
    %p45 = scmp.eq.s32.totalorder %s14, 1
    %p46 = por %p44, %p45
    %p47 = scmp.ne.s32.totalorder %s36, %s37
    %p48 = scmp.eq.s32.totalorder %s14, 0
    %p49 = por %p47, %p48
    %p50 = scmp.ne.s32.totalorder %s36, %s37
    %p51 = scmp.eq.s32.totalorder %s15, 1
    %p52 = por %p50, %p51
    %p54 = scmp.ne.s32.totalorder %s37, %s53
    %p55 = scmp.eq.s32.totalorder %s15, 0
    %p56 = por %p54, %p55
    %s57 = ssub.s32 %s17, %s24
    %p58 = scmp.eq.s32.totalorder %s57, 0
    %s60 = sadd.s32 %s59, 1
    %s61 = scalar_select %p58, %s59, %s60
    %p64 = pneg %p58
    %p65 = scmp.eq.s32.totalorder %s9, 1
    %p66 = por %p64, %p65
    %p67 = scmp.ne.s32.totalorder %s59, %s62
    %p68 = scmp.eq.s32.totalorder %s9, 0
    %p69 = por %p67, %p68
    %p70 = scmp.ne.s32.totalorder %s59, %s62
    %p71 = scmp.eq.s32.totalorder %s14, 1
    %p72 = por %p70, %p71
    %p73 = scmp.ne.s32.totalorder %s62, %s63
    %p74 = scmp.eq.s32.totalorder %s14, 0
    %p75 = por %p73, %p74
    %p76 = scmp.ne.s32.totalorder %s62, %s63
    %p77 = scmp.eq.s32.totalorder %s15, 1
    %p78 = por %p76, %p77
    %p80 = scmp.ne.s32.totalorder %s63, %s79
    %p81 = scmp.eq.s32.totalorder %s15, 0
    %p82 = por %p80, %p81
    %s83 = ssub.s32 %s17, %s24
    %p84 = scmp.eq.s32.totalorder %s83, 0
    %s86 = sadd.s32 %s85, 1
    %s87 = scalar_select %p84, %s85, %s86
    %p90 = pneg %p84
    %p91 = scmp.eq.s32.totalorder %s9, 1
    %p92 = por %p90, %p91
    %p93 = scmp.ne.s32.totalorder %s85, %s88
    %p94 = scmp.eq.s32.totalorder %s9, 0
    %p95 = por %p93, %p94
    %p96 = scmp.ne.s32.totalorder %s85, %s88
    %p97 = scmp.eq.s32.totalorder %s14, 1
    %p98 = por %p96, %p97
    %p99 = scmp.ne.s32.totalorder %s88, %s89
    %p100 = scmp.eq.s32.totalorder %s14, 0
    %p101 = por %p99, %p100
    %p102 = scmp.ne.s32.totalorder %s88, %s89
    %p103 = scmp.eq.s32.totalorder %s15, 1
    %p104 = por %p102, %p103
    %p106 = scmp.ne.s32.totalorder %s89, %s105
    %p107 = scmp.eq.s32.totalorder %s15, 0
    %p108 = por %p106, %p107
    %s109 = ssub.s32 %s16, %s28
    %s110 = ssub.s32 %s17, %s24
    %s111 = sor.u32 %s109, %s110
    %p112 = scmp.eq.s32.totalorder %s111, 0
    %s114 = sadd.s32 %s113, 1
    %s115 = scalar_select %p112, %s113, %s114
    %p118 = pneg %p112
    %p119 = scmp.eq.s32.totalorder %s9, 1
    %p120 = por %p118, %p119
    %p121 = scmp.ne.s32.totalorder %s113, %s116
    %p122 = scmp.eq.s32.totalorder %s9, 0
    %p123 = por %p121, %p122
    %p124 = scmp.ne.s32.totalorder %s113, %s116
    %p125 = scmp.eq.s32.totalorder %s14, 1
    %p126 = por %p124, %p125
    %p127 = scmp.ne.s32.totalorder %s116, %s117
    %p128 = scmp.eq.s32.totalorder %s14, 0
    %p129 = por %p127, %p128
    %p130 = scmp.ne.s32.totalorder %s116, %s117
    %p131 = scmp.eq.s32.totalorder %s15, 1
    %p132 = por %p130, %p131
    %p134 = scmp.ne.s32.totalorder %s117, %s133
    %p135 = scmp.eq.s32.totalorder %s15, 0
    %p136 = por %p134, %p135
    %p137 = scmp.le.s32.totalorder 1, %s9
    %p138 = scmp.lt.s32.totalorder %s9, 3
    %p139 = pnand %p137, %p138
    %p140 = pneg %p139
    // Predicated region
    $region9: #{unet_skip_block_forward.5} parent=5 // pred_check
      _
    $region10: #{unet_skip_block_forward.5} parent=5 // pred_check_branch
      %142 = sbr.rel (%p139) target = $region12
    $region11: #{unet_skip_block_forward.5} parent=5 // pred_region
      %s143 = ssub.s32 %s9, 1
      // Predicated region
      $region13: #{unet_skip_block_forward.5} parent=11 // pred_check
        %p144 = pneg %p75
      $region14: #{unet_skip_block_forward.5} parent=11 // pred_check_branch
        %146 = sbr.rel (%p144) target = $region16
      $region15: #{unet_skip_block_forward.5} parent=11 // pred_region
        %p147 = scmp.lt.s32.totalorder %s19, 0
        %s148 = scalar_select %p147, %s19, 0
        %s149 = scalar_lea.vmem %s1, %s148
      $region16: #{unet_skip_block_forward.5} parent=11 // pred_fallthru
        _
      // Predicated region
      $region17: #{unet_skip_block_forward.5} parent=11 // pred_check
        %p150 = pneg %p101
      $region18: #{unet_skip_block_forward.5} parent=11 // pred_check_branch
        %152 = sbr.rel (%p150) target = $region20
      $region19: #{unet_skip_block_forward.5} parent=11 // pred_region
        %p153 = scmp.lt.s32.totalorder %s19, 0
        %s154 = scalar_select %p153, %s19, 0
        %s155 = scalar_lea.vmem %s2, %s154
      $region20: #{unet_skip_block_forward.5} parent=11 // pred_fallthru
        _
    $region12: #{unet_skip_block_forward.5} parent=5 // pred_fallthru
      _
    %p156 = scmp.lt.s32.totalorder %s9, 2
    // Predicated region
    $region21: #{unet_skip_block_forward.5} parent=5 // pred_check
      %p157 = pneg %p156
    $region22: #{unet_skip_block_forward.5} parent=5 // pred_check_branch
      %159 = sbr.rel (%p157) target = $region24
    $region23: #{unet_skip_block_forward.5} parent=5 // pred_region
      // Predicated region
      $region25: #{unet_skip_block_forward.5} parent=23 // pred_check
        %p160 = pneg %p43
      $region26: #{unet_skip_block_forward.5} parent=23 // pred_check_branch
        %162 = sbr.rel (%p160) target = $region28
      $region27: #{unet_skip_block_forward.5} parent=23 // pred_region
        %p163 = scmp.lt.s32.totalorder %s16, 1
        %s164 = scalar_select %p163, %s16, 1
        %p165 = scmp.lt.s32.totalorder %s17, 0
        %s166 = scalar_select %p165, %s17, 0
        %s167 = smul.addr %s164, 32
        %s168 = sadd.s32 %s166, %s167
        %s169 = smul.addr %s168, 8
        %s170 = scalar_lea.vmem %s0, %s169
      $region28: #{unet_skip_block_forward.5} parent=23 // pred_fallthru
        _
    $region24: #{unet_skip_block_forward.5} parent=5 // pred_fallthru
      _
    %p171 = scmp.le.s32.totalorder 1, %s9
    %p172 = scmp.lt.s32.totalorder %s9, 3
    %p173 = pnand %p171, %p172
    %p174 = pneg %p173
    // Predicated region
    $region29: #{unet_skip_block_forward.5} parent=5 // pred_check
      _
    $region30: #{unet_skip_block_forward.5} parent=5 // pred_check_branch
      %176 = sbr.rel (%p173) target = $region32
    $region31: #{unet_skip_block_forward.5} parent=5 // pred_region
      %s177 = ssub.s32 %s9, 1
      %p178 = scmp.lt.s32.totalorder %s18, 1
      %s179 = scalar_select %p178, %s18, 1
      %p180 = scmp.lt.s32.totalorder %s19, 0
      %s181 = scalar_select %p180, %s19, 0
      %s182 = smul.addr %s179, 32
      %s183 = sadd.s32 %s181, %s182
      %s184 = smul.addr %s183, 8
      %s185 = scalar_lea.vmem %s0, %s184
      %p186 = pneg %p49
      %p187 = pneg %p46
      %p188 = scmp.lt.s32.totalorder %s19, 0
      %s189 = scalar_select %p188, %s19, 0
      %s190 = scalar_lea.vmem %s1, %s189
      %p191 = pneg %p75
      %p192 = pneg %p72
      %p193 = scmp.lt.s32.totalorder %s19, 0
      %s194 = scalar_select %p193, %s19, 0
      %s195 = scalar_lea.vmem %s2, %s194
      %p196 = pneg %p101
      %p197 = pneg %p98
      %p198 = pneg %p129
      %p199 = pneg %p126
      %p200 = scmp.lt.s32.totalorder %s18, 1
      %s201 = scalar_select %p200, %s18, 1
      %p202 = scmp.lt.s32.totalorder %s19, 0
      %s203 = scalar_select %p202, %s19, 0
      %s204 = smul.addr %s201, 32
      %s205 = sadd.s32 %s203, %s204
      %s206 = smul.addr %s205, 8
      %s207 = scalar_lea.vmem %s3, %s206
      %p208 = scmp.lt.s32.totalorder %s18, 1
      %s209 = scalar_select %p208, %s18, 1
      %p210 = scmp.lt.s32.totalorder %s19, 0
      %s211 = scalar_select %p210, %s19, 0
      %s212 = smul.addr %s209, 32
      %s213 = sadd.s32 %s211, %s212
      %s214 = smul.addr %s213, 8
      %s215 = scalar_lea.vmem %s0, %s214
      %p216 = scmp.lt.s32.totalorder %s19, 0
      %s217 = scalar_select %p216, %s19, 0
      %s218 = scalar_lea.vmem %s1, %s217
      %p219 = scmp.lt.s32.totalorder %s19, 0
      %s220 = scalar_select %p219, %s19, 0
      %s221 = scalar_lea.vmem %s2, %s220
      %p222 = scmp.lt.s32.totalorder %s18, 1
      %s223 = scalar_select %p222, %s18, 1
      %p224 = scmp.lt.s32.totalorder %s19, 0
      %s225 = scalar_select %p224, %s19, 0
      %s226 = smul.addr %s223, 32
      %s227 = sadd.s32 %s225, %s226
      %s228 = smul.addr %s227, 8
      %s229 = scalar_lea.vmem %s3, %s228
      %v230 = vld [vmem:[%s218] sm:$0x1]
      %v231 = vld [vmem:[%s221] sm:$0x1]
      %v232 = vld [vmem:[%s215] sm:$0xff]
      %v233 = vld [vmem:[%s215 + $0x8] sm:$0xff]
      %v234 = vld [vmem:[%s215 + $0x10] sm:$0xff]
      %v235 = vld [vmem:[%s215 + $0x18] sm:$0xff]
      %v236 = vld [vmem:[%s215 + $0x20] sm:$0xff]
      %v237 = vld [vmem:[%s215 + $0x28] sm:$0xff]
      %v238 = vld [vmem:[%s215 + $0x30] sm:$0xff]
      %v239 = vld [vmem:[%s215 + $0x38] sm:$0xff]
      %v240 = vld [vmem:[%s215 + $0x40] sm:$0xff]
      %v241 = vld [vmem:[%s215 + $0x48] sm:$0xff]
      %v242 = vld [vmem:[%s215 + $0x50] sm:$0xff]
      %v243 = vld [vmem:[%s215 + $0x58] sm:$0xff]
      %v244 = vld [vmem:[%s215 + $0x60] sm:$0xff]
      %v245 = vld [vmem:[%s215 + $0x68] sm:$0xff]
      %v246 = vld [vmem:[%s215 + $0x70] sm:$0xff]
      %v247 = vld [vmem:[%s215 + $0x78] sm:$0xff]
      %v248 = vld [vmem:[%s215 + $0x80] sm:$0xff]
      %v249 = vld [vmem:[%s215 + $0x88] sm:$0xff]
      %v250 = vld [vmem:[%s215 + $0x90] sm:$0xff]
      %v251 = vld [vmem:[%s215 + $0x98] sm:$0xff]
      %v252 = vld [vmem:[%s215 + $0xa0] sm:$0xff]
      %v253 = vld [vmem:[%s215 + $0xa8] sm:$0xff]
      %v254 = vld [vmem:[%s215 + $0xb0] sm:$0xff]
      %v255 = vld [vmem:[%s215 + $0xb8] sm:$0xff]
      %v256 = vld [vmem:[%s215 + $0xc0] sm:$0xff]
      %v257 = vld [vmem:[%s215 + $0xc8] sm:$0xff]
      %v258 = vld [vmem:[%s215 + $0xd0] sm:$0xff]
      %v259 = vld [vmem:[%s215 + $0xd8] sm:$0xff]
      %v260 = vld [vmem:[%s215 + $0xe0] sm:$0xff]
      %v261 = vld [vmem:[%s215 + $0xe8] sm:$0xff]
      %v262 = vld [vmem:[%s215 + $0xf0] sm:$0xff]
      %v263 = vld [vmem:[%s215 + $0xf8] sm:$0xff]
      %v265 = vperm.slane %v230, 0
      %v267 = vmul.f32 %v232, %v265
      %v268 = vmul.f32 %v233, %v265
      %v269 = vmul.f32 %v234, %v265
      %v270 = vmul.f32 %v235, %v265
      %v271 = vmul.f32 %v236, %v265
      %v272 = vmul.f32 %v237, %v265
      %v273 = vmul.f32 %v238, %v265
      %v274 = vmul.f32 %v239, %v265
      %v275 = vmul.f32 %v240, %v265
      %v276 = vmul.f32 %v241, %v265
      %v277 = vmul.f32 %v242, %v265
      %v278 = vmul.f32 %v243, %v265
      %v279 = vmul.f32 %v244, %v265
      %v280 = vmul.f32 %v245, %v265
      %v281 = vmul.f32 %v246, %v265
      %v282 = vmul.f32 %v247, %v265
      %v283 = vmul.f32 %v248, %v265
      %v284 = vmul.f32 %v249, %v265
      %v285 = vmul.f32 %v250, %v265
      %v286 = vmul.f32 %v251, %v265
      %v287 = vmul.f32 %v252, %v265
      %v288 = vmul.f32 %v253, %v265
      %v289 = vmul.f32 %v254, %v265
      %v290 = vmul.f32 %v255, %v265
      %v291 = vmul.f32 %v256, %v265
      %v292 = vmul.f32 %v257, %v265
      %v293 = vmul.f32 %v258, %v265
      %v294 = vmul.f32 %v259, %v265
      %v295 = vmul.f32 %v260, %v265
      %v296 = vmul.f32 %v261, %v265
      %v297 = vmul.f32 %v262, %v265
      %v298 = vmul.f32 %v263, %v265
      %v300 = vperm.slane %v231, 0
      %v302 = vadd.f32 %v267, %v300
      %v303 = vadd.f32 %v268, %v300
      %v304 = vadd.f32 %v269, %v300
      %v305 = vadd.f32 %v270, %v300
      %v306 = vadd.f32 %v271, %v300
      %v307 = vadd.f32 %v272, %v300
      %v308 = vadd.f32 %v273, %v300
      %v309 = vadd.f32 %v274, %v300
      %v310 = vadd.f32 %v275, %v300
      %v311 = vadd.f32 %v276, %v300
      %v312 = vadd.f32 %v277, %v300
      %v313 = vadd.f32 %v278, %v300
      %v314 = vadd.f32 %v279, %v300
      %v315 = vadd.f32 %v280, %v300
      %v316 = vadd.f32 %v281, %v300
      %v317 = vadd.f32 %v282, %v300
      %v318 = vadd.f32 %v283, %v300
      %v319 = vadd.f32 %v284, %v300
      %v320 = vadd.f32 %v285, %v300
      %v321 = vadd.f32 %v286, %v300
      %v322 = vadd.f32 %v287, %v300
      %v323 = vadd.f32 %v288, %v300
      %v324 = vadd.f32 %v289, %v300
      %v325 = vadd.f32 %v290, %v300
      %v326 = vadd.f32 %v291, %v300
      %v327 = vadd.f32 %v292, %v300
      %v328 = vadd.f32 %v293, %v300
      %v329 = vadd.f32 %v294, %v300
      %v330 = vadd.f32 %v295, %v300
      %v331 = vadd.f32 %v296, %v300
      %v332 = vadd.f32 %v297, %v300
      %v333 = vadd.f32 %v298, %v300
      %vm334 = vcmask 64512
      %335 = vst.msk [vmem:[%s229] sm:$0xff] %vm334, %v302
      %336 = vst.msk [vmem:[%s229 + $0x8] sm:$0xff] %vm334, %v303
      %337 = vst.msk [vmem:[%s229 + $0x10] sm:$0xff] %vm334, %v304
      %338 = vst.msk [vmem:[%s229 + $0x18] sm:$0xff] %vm334, %v305
      %339 = vst.msk [vmem:[%s229 + $0x20] sm:$0xff] %vm334, %v306
      %340 = vst.msk [vmem:[%s229 + $0x28] sm:$0xff] %vm334, %v307
      %341 = vst.msk [vmem:[%s229 + $0x30] sm:$0xff] %vm334, %v308
      %342 = vst.msk [vmem:[%s229 + $0x38] sm:$0xff] %vm334, %v309
      %343 = vst.msk [vmem:[%s229 + $0x40] sm:$0xff] %vm334, %v310
      %344 = vst.msk [vmem:[%s229 + $0x48] sm:$0xff] %vm334, %v311
      %345 = vst.msk [vmem:[%s229 + $0x50] sm:$0xff] %vm334, %v312
      %346 = vst.msk [vmem:[%s229 + $0x58] sm:$0xff] %vm334, %v313
      %347 = vst.msk [vmem:[%s229 + $0x60] sm:$0xff] %vm334, %v314
      %348 = vst.msk [vmem:[%s229 + $0x68] sm:$0xff] %vm334, %v315
      %349 = vst.msk [vmem:[%s229 + $0x70] sm:$0xff] %vm334, %v316
      %350 = vst.msk [vmem:[%s229 + $0x78] sm:$0xff] %vm334, %v317
      %351 = vst.msk [vmem:[%s229 + $0x80] sm:$0xff] %vm334, %v318
      %352 = vst.msk [vmem:[%s229 + $0x88] sm:$0xff] %vm334, %v319
      %353 = vst.msk [vmem:[%s229 + $0x90] sm:$0xff] %vm334, %v320
      %354 = vst.msk [vmem:[%s229 + $0x98] sm:$0xff] %vm334, %v321
      %355 = vst.msk [vmem:[%s229 + $0xa0] sm:$0xff] %vm334, %v322
      %356 = vst.msk [vmem:[%s229 + $0xa8] sm:$0xff] %vm334, %v323
      %357 = vst.msk [vmem:[%s229 + $0xb0] sm:$0xff] %vm334, %v324
      %358 = vst.msk [vmem:[%s229 + $0xb8] sm:$0xff] %vm334, %v325
      %359 = vst.msk [vmem:[%s229 + $0xc0] sm:$0xff] %vm334, %v326
      %360 = vst.msk [vmem:[%s229 + $0xc8] sm:$0xff] %vm334, %v327
      %361 = vst.msk [vmem:[%s229 + $0xd0] sm:$0xff] %vm334, %v328
      %362 = vst.msk [vmem:[%s229 + $0xd8] sm:$0xff] %vm334, %v329
      %363 = vst.msk [vmem:[%s229 + $0xe0] sm:$0xff] %vm334, %v330
      %364 = vst.msk [vmem:[%s229 + $0xe8] sm:$0xff] %vm334, %v331
      %365 = vst.msk [vmem:[%s229 + $0xf0] sm:$0xff] %vm334, %v332
      %366 = vst.msk [vmem:[%s229 + $0xf8] sm:$0xff] %vm334, %v333
      %p367 = scmp.lt.s32.totalorder %s18, 1
      %s368 = scalar_select %p367, %s18, 1
      %p369 = scmp.lt.s32.totalorder %s19, 0
      %s370 = scalar_select %p369, %s19, 0
      %s371 = smul.addr %s368, 32
      %s372 = sadd.s32 %s370, %s371
      %s373 = smul.addr %s372, 8
      %s374 = scalar_lea.vmem %s3, %s373
      // Predicated region
      $region33: #{unet_skip_block_forward.5} parent=31 // pred_check
        %p375 = pneg %p126
      $region34: #{unet_skip_block_forward.5} parent=31 // pred_check_branch
        %377 = sbr.rel (%p375) target = $region36
      $region35: #{unet_skip_block_forward.5} parent=31 // pred_region
        _
      $region36: #{unet_skip_block_forward.5} parent=31 // pred_fallthru
        _
    $region32: #{unet_skip_block_forward.5} parent=5 // pred_fallthru
      _
    %p378 = scmp.le.s32.totalorder 2, %s9
    // Predicated region
    $region37: #{unet_skip_block_forward.5} parent=5 // pred_check
      %p379 = pneg %p378
    $region38: #{unet_skip_block_forward.5} parent=5 // pred_check_branch
      %381 = sbr.rel (%p379) target = $region40
    $region39: #{unet_skip_block_forward.5} parent=5 // pred_region
      %s382 = ssub.s32 %s9, 2
      // Predicated region
      $region41: #{unet_skip_block_forward.5} parent=39 // pred_check
        %p383 = pneg %p132
      $region42: #{unet_skip_block_forward.5} parent=39 // pred_check_branch
        %385 = sbr.rel (%p383) target = $region44
      $region43: #{unet_skip_block_forward.5} parent=39 // pred_region
        %p386 = scmp.lt.s32.totalorder %s20, 1
        %s387 = scalar_select %p386, %s20, 1
        %p388 = scmp.lt.s32.totalorder %s21, 0
        %s389 = scalar_select %p388, %s21, 0
        %s390 = smul.addr %s387, 32
        %s391 = sadd.s32 %s389, %s390
        %s392 = smul.addr %s391, 8
        %s393 = scalar_lea.vmem %s3, %s392
      $region44: #{unet_skip_block_forward.5} parent=39 // pred_fallthru
        _
    $region40: #{unet_skip_block_forward.5} parent=5 // pred_fallthru
      _
  $region6: #{unet_skip_block_forward.5} parent=0 // loop_footer
    %s13 = sadd.s32 1, %s9
  $region7: #{unet_skip_block_forward.5} parent=0 // loop_footer_branch
    %8 = sbr.rel target = $region3
  $region8: #{unet_skip_block_forward.5} parent=0 // loop_exit
    _

</llo_original>
